<compile_context>
chip_gen: v5e
topology: v5e:2x2
jax: 0.10.0
libtpu: 0.0.40
codegen_flags: <defaults>
</compile_context>

<pallas_src>
import functools

import jax
import jax.numpy as jnp
from jax.experimental import pallas as pl
from jax.experimental.pallas import tpu as pltpu

LN_EPS = 1e-5
BN_EPS = 1e-5


def _silu(x):
    return x * jax.nn.sigmoid(x)


def _layernorm(x, w, b):
    mu = jnp.mean(x, axis=-1, keepdims=True)
    var = jnp.mean((x - mu) ** 2, axis=-1, keepdims=True)
    return (x - mu) * jax.lax.rsqrt(var + LN_EPS) * w + b


def _round_up(v, m):
    return (v + m - 1) // m * m


def _probe_single_buffer():
    """Feature-detect pipeline_mode=pl.Buffered(1) support (narrow, construction-time)."""
    try:
        pl.BlockSpec((8, 128), lambda i: (0, 0), pipeline_mode=pl.Buffered(1))
        return True
    except (AttributeError, TypeError):
        return False


_SINGLE_BUFFER_OK = _probe_single_buffer()


def grouped_conv_to_blockdiag(w, groups):
    """PyTorch grouped Conv1d weight (Cout, Cin/groups, K) -> (G, K*Dg, Dg).

    Row ordering is [tap0 in-channels, tap1 in-channels, ...] so the kernel's per-group
    im2col  cols_g[t, k*Dg + ci] @ W[g]  reproduces Conv1d exactly.
    """
    cout, dg, k = w.shape
    g = groups
    assert cout % g == 0 and cout // g == dg, "expects Cin == Cout == dim"
    wr = w.reshape(g, dg, dg, k)            # [g, co, ci, k]
    wt = jnp.transpose(wr, (0, 3, 2, 1))    # [g, k, ci, co]
    return wt.reshape(g, k * dg, dg)


def grouped_conv_to_dense(w, groups):
    """PyTorch grouped Conv1d weight (Cout, Cin/groups, K) -> dense zero-block (K*D, D).

    Row index = k*D + ci_global, column = co_global; zero where group(ci) != group(co).
    Matches the fused im2col layout cols[t, k*D + ci].
    """
    cout, dg, k = w.shape
    d = cout
    g = groups
    wr = w.reshape(g, dg, dg, k)            # [g, co, ci, k]
    dense = jnp.zeros((k, d, d), w.dtype)
    for gi in range(g):
        blk = jnp.transpose(wr[gi], (2, 1, 0))            # [k, ci, co]
        dense = dense.at[:, gi * dg:(gi + 1) * dg, gi * dg:(gi + 1) * dg].set(blk)
    return dense.reshape(k * d, d)


def conv1d_block_kernel(
    xwin_ref,                      # (1, 1, W, D) bf16 — overlapping halo window (pipelined)
    ln1w_ref, ln1b_ref,            # (1, D) f32
    wexp_ref, bexp_ref,            # (D, 2D) bf16, (1, 2D) f32
    wconv_ref,                     # dense: (K*D, D) bf16   OR   grouped: (G, K*Dg, Dg) bf16
    bnscale_ref, bnshift_ref,      # (1, D) f32  (BatchNorm running stats folded)
    wproj_ref, bproj_ref,          # (D, D) bf16, (1, D) f32
    cscale_ref,                    # (1, D) f32  (conv LayerScale)
    ln2w_ref, ln2b_ref,            # (1, D) f32
    wffn1_ref, bffn1_ref,          # (D, 4D) bf16, (1, 4D) f32
    wffn2_ref, bffn2_ref,          # (2D, D) bf16, (1, D) f32
    mscale_ref,                    # (1, D) f32  (mlp LayerScale)
    o_ref,                         # (1, tT, D) f32
    glu_ref,                       # VMEM scratch (W, D) bf16 — post-GLU window for im2col
    *, T, D, K, G, tT, pad_l, fuse_groups,
):
    W = tT + K - 1
    Dg = D // G
    t = pl.program_id(1)

    x_win = xwin_ref[0, 0].astype(jnp.float32)                     # (W, D)
    x_res = xwin_ref[0, 0, pad_l:pad_l + tT, :].astype(jnp.float32)  # residual (aligned ref slice)

    # ---- norm1 + expand_conv + GLU(swish) over the halo window ----
    h = _layernorm(x_win, ln1w_ref[...], ln1b_ref[...]).astype(jnp.bfloat16)
    h = jnp.dot(h, wexp_ref[...], preferred_element_type=jnp.float32) + bexp_ref[...]
    glu = h[:, :D] * _silu(h[:, D:])                               # (W, D) f32

    # zero rows outside the real sequence (== Conv1d 'same' zero padding at both ends)
    gpos = t * tT - pad_l + jax.lax.broadcasted_iota(jnp.int32, (W, 1), 0)
    glu = jnp.where((gpos >= 0) & (gpos < T), glu, 0.0)
    glu_ref[...] = glu.astype(jnp.bfloat16)

    # ---- grouped Conv1d(kernel=K): im2col built from shifted VMEM-ref reads (cheap vld),
    #      not from sublane-offset vreg slices.
    if fuse_groups:
        # dense zero-block weight: one lane-dense (tT, K*D) @ (K*D, D) MXU matmul
        cols = jnp.concatenate([glu_ref[k:k + tT, :] for k in range(K)], axis=-1)
        conv = jnp.dot(cols, wconv_ref[...], preferred_element_type=jnp.float32)
    else:
        # block-diagonal per-group weights (Dg >= 128 in this regime -> aligned lane slices)
        outs = []
        for g in range(G):
            cols_g = jnp.concatenate(
                [glu_ref[k:k + tT, g * Dg:(g + 1) * Dg] for k in range(K)], axis=-1)
            outs.append(jnp.dot(cols_g, wconv_ref[g], preferred_element_type=jnp.float32))
        conv = jnp.concatenate(outs, axis=-1)                      # (tT, D) f32

    # ---- BatchNorm (eval, folded) + swish + conv_proj + LayerScale + residual ----
    y = _silu(conv * bnscale_ref[...] + bnshift_ref[...]).astype(jnp.bfloat16)
    y = jnp.dot(y, wproj_ref[...], preferred_element_type=jnp.float32) + bproj_ref[...]
    conv_out = y * cscale_ref[...] + x_res                         # (tT, D) f32

    # ---- norm2 + GLU-MLP + LayerScale + residual ----
    x2 = _layernorm(conv_out, ln2w_ref[...], ln2b_ref[...]).astype(jnp.bfloat16)
    h2 = jnp.dot(x2, wffn1_ref[...], preferred_element_type=jnp.float32) + bffn1_ref[...]
    m = (h2[:, :2 * D] * _silu(h2[:, 2 * D:])).astype(jnp.bfloat16)
    m = jnp.dot(m, wffn2_ref[...], preferred_element_type=jnp.float32) + bffn2_ref[...]
    o_ref[0] = conv_out + m * mscale_ref[...]


def conv1d_block(x, params, kernel_size=17, groups=4, block_t=256, fuse_groups=None):
    """Fused Conv1DBlock forward. grid = (batch, time tiles); each step consumes an
    auto-pipelined (block_t + K - 1, D) bf16 halo window and writes a lane-dense
    (block_t, D) f32 output tile."""
    B, T, D = x.shape
    K = kernel_size
    G = groups
    assert D % G == 0, "dim must be divisible by groups"
    pad_l = (K - 1) // 2
    pad_r = (K - 1) - pad_l
    # Perf contract (kernel_size=17): aligned residual slice / halo layout needs pad_l % 8 == 0.
    assert pad_l % 8 == 0, "kernel_size must give (K-1)//2 % 8 == 0 (e.g. K=17) for aligned slices"

    if fuse_groups is None:
        # dense zero-block conv weight for small D (full MXU output width);
        # block-diagonal for large D (4x fewer conv FLOPs / weight bytes, Dg >= 128).
        fuse_groups = D <= 256

    # Time-tile heuristics: cap tT for very large D (v7x 64 MiB VMEM), and make sure there
    # are >= 2 grid points when possible so both v7x TensorCores get work.
    bt = block_t
    if D >= 1024:
        bt = min(bt, 128)
    while B * ((T + bt - 1) // bt) < 2 and bt > 8:
        bt = max(8, bt // 2)
    tT = _round_up(max(8, min(bt, _round_up(T, 8))), 8)     # time tile, multiple of 8
    nT = (T + tT - 1) // tT
    t_round = nT * tT
    W = tT + K - 1

    # Pad once (bf16 — halves copy + DMA bytes) and materialize overlapping halo windows:
    # (B, nT, W, D). Extra HBM read is only ~(K-1)/tT; the standard BlockSpec pipeline then
    # double-buffers the window DMA behind compute (no per-step start();wait() stall).
    x_pad = jnp.pad(x.astype(jnp.bfloat16),
                    ((0, 0), (pad_l, pad_r + (t_round - T)), (0, 0)))
    widx = jnp.arange(nT)[:, None] * tT + jnp.arange(W)[None, :]
    x_win = x_pad[:, widx, :]                                # (B, nT, W, D) bf16

    bf = lambda a: a.astype(jnp.bfloat16)                    # matmul weights -> bf16
    v = lambda a: a.reshape(1, -1).astype(jnp.float32)

    if fuse_groups:
        w_conv = bf(grouped_conv_to_dense(params["w_conv"], G))      # (K*D, D)
    else:
        w_conv = bf(grouped_conv_to_blockdiag(params["w_conv"], G))  # (G, K*Dg, Dg)

    args = [
        x_win,
        v(params["ln1_w"]), v(params["ln1_b"]),
        bf(params["w_exp"]), v(params["b_exp"]),
        w_conv,
        v(params["bn_scale"]), v(params["bn_shift"]),
        bf(params["w_proj"]), v(params["b_proj"]),
        v(params["conv_scale"]),
        v(params["ln2_w"]), v(params["ln2_b"]),
        bf(params["w_ffn1"]), v(params["b_ffn1"]),
        bf(params["w_ffn2"]), v(params["b_ffn2"]),
        v(params["mlp_scale"]),
    ]

    kernel = functools.partial(conv1d_block_kernel, T=T, D=D, K=K, G=G, tT=tT,
                               pad_l=pad_l, fuse_groups=fuse_groups)

    # --- VMEM budget (explicit, generation-aware headroom) ---
    weight_bytes = sum(int(a.size) * a.dtype.itemsize for a in args[1:])
    wbuf = 1 if _SINGLE_BUFFER_OK else 2
    act_bytes = (2 * W * D * 2            # double-buffered bf16 halo window
                 + 2 * tT * D * 4         # double-buffered f32 output tile
                 + W * D * 2              # glu VMEM scratch
                 + tT * K * D * 2         # im2col temporary (fused upper bound)
                 + 16 * tT * D * 4)       # live f32 intermediates (h, h2, conv_out, ...)
    vmem_limit = int(min(weight_bytes * wbuf + act_bytes + (32 << 20), 128 << 20))

    # Advisory cost estimate so XLA can schedule/overlap around the custom call.
    conv_factor = K if fuse_groups else K / G
    flops = int(2 * B * T * D * D * (9 + conv_factor))
    transcendentals = int(4 * B * T * D)
    bytes_accessed = int(x_win.size * 2 + weight_bytes + B * t_round * D * 4)
    cost = pl.CostEstimate(flops=flops, transcendentals=transcendentals,
                           bytes_accessed=bytes_accessed)

    def _const_spec(a):
        # grid-invariant weight block; single-buffered when the jax version supports it.
        idx = lambda b, t, _nd=a.ndim: (0,) * _nd
        if _SINGLE_BUFFER_OK:
            return pl.BlockSpec(a.shape, idx, pipeline_mode=pl.Buffered(1))
        return pl.BlockSpec(a.shape, idx)

    in_specs = [pl.BlockSpec((1, 1, W, D), lambda b, t: (b, t, 0, 0))]
    in_specs += [_const_spec(a) for a in args[1:]]

    out = pl.pallas_call(
        kernel,
        out_shape=jax.ShapeDtypeStruct((B, t_round, D), jnp.float32),
        grid=(B, nT),
        in_specs=in_specs,
        out_specs=pl.BlockSpec((1, tT, D), lambda b, t: (b, t, 0)),
        scratch_shapes=[pltpu.VMEM((W, D), jnp.bfloat16)],
        compiler_params=pltpu.CompilerParams(
            dimension_semantics=("parallel", "parallel"),
            vmem_limit_bytes=vmem_limit),
        cost_estimate=cost,
    )(*args)
    return out[:, :T, :]


def init_params(key, dim, kernel_size=17, groups=4, expand=4):
    ks = jax.random.split(key, 12)
    n = lambda i, shape, s: s * jax.random.normal(ks[i], shape, jnp.float32)
    p = {}
    p["ln1_w"] = jnp.ones((dim,), jnp.float32)
    p["ln1_b"] = jnp.zeros((dim,), jnp.float32)
    p["w_exp"] = n(0, (dim, 2 * dim), 0.2)
    p["b_exp"] = n(1, (2 * dim,), 0.1)
    # grouped Conv1d weight in PyTorch layout (Cout, Cin/groups, K), bias=False
    p["w_conv"] = n(2, (dim, dim // groups, kernel_size), 0.15)
    # MaskedBatchNorm1d (eval): fold running stats into scale/shift
    bn_w = 1.0 + n(3, (dim,), 0.1)
    bn_b = n(4, (dim,), 0.1)
    bn_rm = n(5, (dim,), 0.1)
    bn_rv = 1.0 + 0.1 * jnp.abs(jax.random.normal(ks[6], (dim,), jnp.float32))
    p["bn_scale"] = bn_w * jax.lax.rsqrt(bn_rv + BN_EPS)
    p["bn_shift"] = bn_b - bn_rm * p["bn_scale"]
    p["w_proj"] = n(7, (dim, dim), 0.2)
    p["b_proj"] = n(8, (dim,), 0.1)
    p["conv_scale"] = jnp.full((dim,), 0.5, jnp.float32)     # LayerScale gamma
    p["ln2_w"] = jnp.ones((dim,), jnp.float32)
    p["ln2_b"] = jnp.zeros((dim,), jnp.float32)
    p["w_ffn1"] = n(9, (dim, dim * expand), 0.2)
    p["b_ffn1"] = n(10, (dim * expand,), 0.1)
    p["w_ffn2"] = n(11, (dim * expand // 2, dim), 0.2)
    p["b_ffn2"] = jnp.zeros((dim,), jnp.float32)
    p["mlp_scale"] = jnp.full((dim,), 0.5, jnp.float32)      # LayerScale gamma
    return p


def conv1d_block_reference(x, p, kernel_size=17, groups=4):
    """Pure-JAX f32 reference matching the PyTorch Conv1DBlock forward (eval, mask=None)."""
    D = x.shape[-1]
    K = kernel_size
    pad_l = (K - 1) // 2
    pad_r = (K - 1) - pad_l
    h = _layernorm(x, p["ln1_w"], p["ln1_b"])
    h = h @ p["w_exp"] + p["b_exp"]
    h = h[..., :D] * _silu(h[..., D:])
    hc = jnp.transpose(h, (0, 2, 1))
    hc = jax.lax.conv_general_dilated(
        hc, p["w_conv"], window_strides=(1,), padding=[(pad_l, pad_r)],
        dimension_numbers=("NCH", "OIH", "NCH"), feature_group_count=groups)
    h = jnp.transpose(hc, (0, 2, 1))
    h = _silu(h * p["bn_scale"] + p["bn_shift"])
    h = h @ p["w_proj"] + p["b_proj"]
    conv_out = h * p["conv_scale"] + x
    h = _layernorm(conv_out, p["ln2_w"], p["ln2_b"])
    h = h @ p["w_ffn1"] + p["b_ffn1"]
    h = h[..., :2 * D] * _silu(h[..., 2 * D:])
    h = h @ p["w_ffn2"] + p["b_ffn2"]
    return conv_out + h * p["mlp_scale"]


if __name__ == "__main__":
    key = jax.random.PRNGKey(0)
    k_x, k_p = jax.random.split(key)
    B, T, D = 2, 16, 32                      # batch, sequence length, model dim
    x = jax.random.normal(k_x, (B, T, D), jnp.float32)
    params = init_params(k_p, D, kernel_size=17, groups=4, expand=4)

    # block_t=8 -> two time tiles per batch, exercising the halo-window / masking path
    out = conv1d_block(x, params, kernel_size=17, groups=4, block_t=8)
    out = jax.block_until_ready(out)
    assert out.shape == (B, T, D) and out.dtype == jnp.float32
    assert bool(jnp.all(jnp.isfinite(out)))

    ref = conv1d_block_reference(x, params, kernel_size=17, groups=4)
    err = float(jnp.max(jnp.abs(out - ref)))
    # kernel carries the input and matmul operands in bf16 vs the f32 reference
    assert err < 0.25, f"mismatch vs reference: max abs err = {err}"
    print("KERNEL_OK")
</pallas_src>

<mosaic_0001>
module attributes {stable_mosaic.version = 11 : i64} {
  func.func @conv1d_block_kernel(%arg0: i32, %arg1: i32, %arg2: memref<1x1x24x32xbf16, #tpu.memory_space<vmem>>, %arg3: memref<1x32xf32, #tpu.memory_space<vmem>>, %arg4: memref<1x32xf32, #tpu.memory_space<vmem>>, %arg5: memref<32x64xbf16, #tpu.memory_space<vmem>>, %arg6: memref<1x64xf32, #tpu.memory_space<vmem>>, %arg7: memref<544x32xbf16, #tpu.memory_space<vmem>>, %arg8: memref<1x32xf32, #tpu.memory_space<vmem>>, %arg9: memref<1x32xf32, #tpu.memory_space<vmem>>, %arg10: memref<32x32xbf16, #tpu.memory_space<vmem>>, %arg11: memref<1x32xf32, #tpu.memory_space<vmem>>, %arg12: memref<1x32xf32, #tpu.memory_space<vmem>>, %arg13: memref<1x32xf32, #tpu.memory_space<vmem>>, %arg14: memref<1x32xf32, #tpu.memory_space<vmem>>, %arg15: memref<32x128xbf16, #tpu.memory_space<vmem>>, %arg16: memref<1x128xf32, #tpu.memory_space<vmem>>, %arg17: memref<64x32xbf16, #tpu.memory_space<vmem>>, %arg18: memref<1x32xf32, #tpu.memory_space<vmem>>, %arg19: memref<1x32xf32, #tpu.memory_space<vmem>>, %arg20: memref<1x8x32xf32, #tpu.memory_space<vmem>>, %arg21: memref<24x32xbf16, #tpu.memory_space<vmem>>) attributes {dimension_semantics = [#tpu.dimension_semantics<parallel>, #tpu.dimension_semantics<parallel>], iteration_bounds = array<i64: 2, 2>, scalar_prefetch = 0 : i64, scratch_operands = 1 : i64, tpu.core_type = #tpu.core_type<tc>, window_params = [{transform_indices = @transform_0, window_bounds = array<i64: 1, 1, 24, 32>}, {pipeline_mode = #tpu.pipeline_mode<synchronous>, transform_indices = @transform_1, window_bounds = array<i64: 1, 32>}, {pipeline_mode = #tpu.pipeline_mode<synchronous>, transform_indices = @transform_2, window_bounds = array<i64: 1, 32>}, {pipeline_mode = #tpu.pipeline_mode<synchronous>, transform_indices = @transform_3, window_bounds = array<i64: 32, 64>}, {pipeline_mode = #tpu.pipeline_mode<synchronous>, transform_indices = @transform_4, window_bounds = array<i64: 1, 64>}, {pipeline_mode = #tpu.pipeline_mode<synchronous>, transform_indices = @transform_5, window_bounds = array<i64: 544, 32>}, {pipeline_mode = #tpu.pipeline_mode<synchronous>, transform_indices = @transform_6, window_bounds = array<i64: 1, 32>}, {pipeline_mode = #tpu.pipeline_mode<synchronous>, transform_indices = @transform_7, window_bounds = array<i64: 1, 32>}, {pipeline_mode = #tpu.pipeline_mode<synchronous>, transform_indices = @transform_8, window_bounds = array<i64: 32, 32>}, {pipeline_mode = #tpu.pipeline_mode<synchronous>, transform_indices = @transform_9, window_bounds = array<i64: 1, 32>}, {pipeline_mode = #tpu.pipeline_mode<synchronous>, transform_indices = @transform_10, window_bounds = array<i64: 1, 32>}, {pipeline_mode = #tpu.pipeline_mode<synchronous>, transform_indices = @transform_11, window_bounds = array<i64: 1, 32>}, {pipeline_mode = #tpu.pipeline_mode<synchronous>, transform_indices = @transform_12, window_bounds = array<i64: 1, 32>}, {pipeline_mode = #tpu.pipeline_mode<synchronous>, transform_indices = @transform_13, window_bounds = array<i64: 32, 128>}, {pipeline_mode = #tpu.pipeline_mode<synchronous>, transform_indices = @transform_14, window_bounds = array<i64: 1, 128>}, {pipeline_mode = #tpu.pipeline_mode<synchronous>, transform_indices = @transform_15, window_bounds = array<i64: 64, 32>}, {pipeline_mode = #tpu.pipeline_mode<synchronous>, transform_indices = @transform_16, window_bounds = array<i64: 1, 32>}, {pipeline_mode = #tpu.pipeline_mode<synchronous>, transform_indices = @transform_17, window_bounds = array<i64: 1, 32>}, {transform_indices = @transform_18, window_bounds = array<i64: 1, 8, 32>}]} {
    %c0 = arith.constant 0 : index
    %c0_0 = arith.constant 0 : index
    %c0_1 = arith.constant 0 : index
    %c0_2 = arith.constant 0 : index
    %0 = vector.load %arg2[%c0, %c0_0, %c0_1, %c0_2] : memref<1x1x24x32xbf16, #tpu.memory_space<vmem>>, vector<1x1x24x32xbf16>
    %1 = vector.shape_cast %0 : vector<1x1x24x32xbf16> to vector<24x32xbf16>
    %2 = arith.extf %1 : vector<24x32xbf16> to vector<24x32xf32>
    %c0_3 = arith.constant 0 : index
    %c0_4 = arith.constant 0 : index
    %c8 = arith.constant 8 : index
    %c0_5 = arith.constant 0 : index
    %3 = vector.load %arg2[%c0_3, %c0_4, %c8, %c0_5] : memref<1x1x24x32xbf16, #tpu.memory_space<vmem>>, vector<1x1x8x32xbf16>
    %4 = vector.shape_cast %3 : vector<1x1x8x32xbf16> to vector<8x32xbf16>
    %5 = arith.extf %4 : vector<8x32xbf16> to vector<8x32xf32>
    %c0_6 = arith.constant 0 : index
    %c0_7 = arith.constant 0 : index
    %6 = vector.load %arg3[%c0_6, %c0_7] : memref<1x32xf32, #tpu.memory_space<vmem>>, vector<1x32xf32>
    %c0_8 = arith.constant 0 : index
    %c0_9 = arith.constant 0 : index
    %7 = vector.load %arg4[%c0_8, %c0_9] : memref<1x32xf32, #tpu.memory_space<vmem>>, vector<1x32xf32>
    %cst = arith.constant dense<0.000000e+00> : vector<24xf32>
    %8 = vector.multi_reduction <add>, %2, %cst [1] : vector<24x32xf32> to vector<24xf32>
    %9 = vector.shape_cast %8 : vector<24xf32> to vector<24x1xf32>
    %cst_10 = arith.constant 3.200000e+01 : f32
    %10 = vector.broadcast %cst_10 : f32 to vector<24x1xf32>
    %11 = arith.divf %9, %10 : vector<24x1xf32>
    %12 = vector.broadcast %11 : vector<24x1xf32> to vector<24x32xf32>
    %13 = arith.subf %2, %12 : vector<24x32xf32>
    %14 = arith.mulf %13, %13 : vector<24x32xf32>
    %cst_11 = arith.constant dense<0.000000e+00> : vector<24xf32>
    %15 = vector.multi_reduction <add>, %14, %cst_11 [1] : vector<24x32xf32> to vector<24xf32>
    %16 = vector.shape_cast %15 : vector<24xf32> to vector<24x1xf32>
    %cst_12 = arith.constant 3.200000e+01 : f32
    %17 = vector.broadcast %cst_12 : f32 to vector<24x1xf32>
    %18 = arith.divf %16, %17 : vector<24x1xf32>
    %19 = vector.broadcast %11 : vector<24x1xf32> to vector<24x32xf32>
    %20 = arith.subf %2, %19 : vector<24x32xf32>
    %cst_13 = arith.constant 9.99999974E-6 : f32
    %21 = vector.broadcast %cst_13 : f32 to vector<24x1xf32>
    %22 = arith.addf %18, %21 : vector<24x1xf32>
    %23 = math.rsqrt %22 : vector<24x1xf32>
    %24 = vector.broadcast %23 : vector<24x1xf32> to vector<24x32xf32>
    %25 = arith.mulf %20, %24 : vector<24x32xf32>
    %26 = vector.broadcast %6 : vector<1x32xf32> to vector<24x32xf32>
    %27 = arith.mulf %25, %26 : vector<24x32xf32>
    %28 = vector.broadcast %7 : vector<1x32xf32> to vector<24x32xf32>
    %29 = arith.addf %27, %28 : vector<24x32xf32>
    %30 = arith.truncf %29 : vector<24x32xf32> to vector<24x32xbf16>
    %c0_14 = arith.constant 0 : index
    %c0_15 = arith.constant 0 : index
    %31 = vector.load %arg5[%c0_14, %c0_15] : memref<32x64xbf16, #tpu.memory_space<vmem>>, vector<32x64xbf16>
    %cst_16 = arith.constant dense<0.000000e+00> : vector<24x64xf32>
    %32 = tpu.matmul %30, %31, %cst_16 {dimension_numbers = #tpu.dot_dimension_numbers<[1], [0], [0], [1], [0, 0, 1, 1], [], []>} : vector<24x32xbf16>, vector<32x64xbf16>, vector<24x64xf32> -> vector<24x64xf32>
    %c0_17 = arith.constant 0 : index
    %c0_18 = arith.constant 0 : index
    %33 = vector.load %arg6[%c0_17, %c0_18] : memref<1x64xf32, #tpu.memory_space<vmem>>, vector<1x64xf32>
    %34 = vector.broadcast %33 : vector<1x64xf32> to vector<24x64xf32>
    %35 = arith.addf %32, %34 : vector<24x64xf32>
    %36 = vector.extract_strided_slice %35 {offsets = [0, 0], sizes = [24, 32], strides = [1, 1]} : vector<24x64xf32> to vector<24x32xf32>
    %37 = vector.extract_strided_slice %35 {offsets = [0, 32], sizes = [24, 32], strides = [1, 1]} : vector<24x64xf32> to vector<24x32xf32>
    %38 = arith.negf %37 : vector<24x32xf32>
    %39 = math.exp %38 : vector<24x32xf32>
    %cst_19 = arith.constant 1.000000e+00 : f32
    %40 = vector.broadcast %cst_19 : f32 to vector<24x32xf32>
    %41 = arith.addf %40, %39 : vector<24x32xf32>
    %42 = arith.divf %40, %41 : vector<24x32xf32>
    %43 = arith.mulf %37, %42 : vector<24x32xf32>
    %44 = arith.mulf %36, %43 : vector<24x32xf32>
    %c8_i32 = arith.constant 8 : i32
    %45 = arith.muli %arg1, %c8_i32 : i32
    %c8_i32_20 = arith.constant 8 : i32
    %46 = arith.subi %45, %c8_i32_20 : i32
    %47 = tpu.iota {dimensions = array<i32: 0>} : vector<24x1xi32>
    %48 = vector.broadcast %46 : i32 to vector<24x1xi32>
    %49 = arith.addi %48, %47 : vector<24x1xi32>
    %c0_i32 = arith.constant 0 : i32
    %50 = vector.broadcast %c0_i32 : i32 to vector<24x1xi32>
    %51 = arith.cmpi sge, %49, %50 : vector<24x1xi32>
    %c16_i32 = arith.constant 16 : i32
    %52 = vector.broadcast %c16_i32 : i32 to vector<24x1xi32>
    %53 = arith.cmpi slt, %49, %52 : vector<24x1xi32>
    %54 = arith.andi %51, %53 : vector<24x1xi1>
    %cst_21 = arith.constant 0.000000e+00 : f32
    %55 = vector.shape_cast %54 : vector<24x1xi1> to vector<24x1xi1>
    %56 = vector.broadcast %55 : vector<24x1xi1> to vector<24x32xi1>
    %57 = vector.broadcast %cst_21 : f32 to vector<24x32xf32>
    %58 = arith.select %56, %44, %57 : vector<24x32xi1>, vector<24x32xf32>
    %59 = arith.truncf %58 : vector<24x32xf32> to vector<24x32xbf16>
    %c0_22 = arith.constant 0 : index
    %c0_23 = arith.constant 0 : index
    %60 = vector.load %arg21[%c0_22, %c0_23] : memref<24x32xbf16, #tpu.memory_space<vmem>>, vector<24x32xbf16>
    tpu.vector_store %arg21[%c0_22, %c0_23], %59 {strides = array<i32>} : memref<24x32xbf16, #tpu.memory_space<vmem>>, vector<24x32xbf16>,
    %c0_24 = arith.constant 0 : index
    %c0_25 = arith.constant 0 : index
    %61 = vector.load %arg21[%c0_24, %c0_25] : memref<24x32xbf16, #tpu.memory_space<vmem>>, vector<8x32xbf16>
    %c1 = arith.constant 1 : index
    %c0_26 = arith.constant 0 : index
    %62 = vector.load %arg21[%c1, %c0_26] : memref<24x32xbf16, #tpu.memory_space<vmem>>, vector<8x32xbf16>
    %c2 = arith.constant 2 : index
    %c0_27 = arith.constant 0 : index
    %63 = vector.load %arg21[%c2, %c0_27] : memref<24x32xbf16, #tpu.memory_space<vmem>>, vector<8x32xbf16>
    %c3 = arith.constant 3 : index
    %c0_28 = arith.constant 0 : index
    %64 = vector.load %arg21[%c3, %c0_28] : memref<24x32xbf16, #tpu.memory_space<vmem>>, vector<8x32xbf16>
    %c4 = arith.constant 4 : index
    %c0_29 = arith.constant 0 : index
    %65 = vector.load %arg21[%c4, %c0_29] : memref<24x32xbf16, #tpu.memory_space<vmem>>, vector<8x32xbf16>
    %c5 = arith.constant 5 : index
    %c0_30 = arith.constant 0 : index
    %66 = vector.load %arg21[%c5, %c0_30] : memref<24x32xbf16, #tpu.memory_space<vmem>>, vector<8x32xbf16>
    %c6 = arith.constant 6 : index
    %c0_31 = arith.constant 0 : index
    %67 = vector.load %arg21[%c6, %c0_31] : memref<24x32xbf16, #tpu.memory_space<vmem>>, vector<8x32xbf16>
    %c7 = arith.constant 7 : index
    %c0_32 = arith.constant 0 : index
    %68 = vector.load %arg21[%c7, %c0_32] : memref<24x32xbf16, #tpu.memory_space<vmem>>, vector<8x32xbf16>
    %c8_33 = arith.constant 8 : index
    %c0_34 = arith.constant 0 : index
    %69 = vector.load %arg21[%c8_33, %c0_34] : memref<24x32xbf16, #tpu.memory_space<vmem>>, vector<8x32xbf16>
    %c9 = arith.constant 9 : index
    %c0_35 = arith.constant 0 : index
    %70 = vector.load %arg21[%c9, %c0_35] : memref<24x32xbf16, #tpu.memory_space<vmem>>, vector<8x32xbf16>
    %c10 = arith.constant 10 : index
    %c0_36 = arith.constant 0 : index
    %71 = vector.load %arg21[%c10, %c0_36] : memref<24x32xbf16, #tpu.memory_space<vmem>>, vector<8x32xbf16>
    %c11 = arith.constant 11 : index
    %c0_37 = arith.constant 0 : index
    %72 = vector.load %arg21[%c11, %c0_37] : memref<24x32xbf16, #tpu.memory_space<vmem>>, vector<8x32xbf16>
    %c12 = arith.constant 12 : index
    %c0_38 = arith.constant 0 : index
    %73 = vector.load %arg21[%c12, %c0_38] : memref<24x32xbf16, #tpu.memory_space<vmem>>, vector<8x32xbf16>
    %c13 = arith.constant 13 : index
    %c0_39 = arith.constant 0 : index
    %74 = vector.load %arg21[%c13, %c0_39] : memref<24x32xbf16, #tpu.memory_space<vmem>>, vector<8x32xbf16>
    %c14 = arith.constant 14 : index
    %c0_40 = arith.constant 0 : index
    %75 = vector.load %arg21[%c14, %c0_40] : memref<24x32xbf16, #tpu.memory_space<vmem>>, vector<8x32xbf16>
    %c15 = arith.constant 15 : index
    %c0_41 = arith.constant 0 : index
    %76 = vector.load %arg21[%c15, %c0_41] : memref<24x32xbf16, #tpu.memory_space<vmem>>, vector<8x32xbf16>
    %c16 = arith.constant 16 : index
    %c0_42 = arith.constant 0 : index
    %77 = vector.load %arg21[%c16, %c0_42] : memref<24x32xbf16, #tpu.memory_space<vmem>>, vector<8x32xbf16>
    %78 = tpu.concatenate %61, %62, %63, %64, %65, %66, %67, %68, %69, %70, %71, %72, %73, %74, %75, %76 in 1 : vector<8x32xbf16>, vector<8x32xbf16>, vector<8x32xbf16>, vector<8x32xbf16>, vector<8x32xbf16>, vector<8x32xbf16>, vector<8x32xbf16>, vector<8x32xbf16>, vector<8x32xbf16>, vector<8x32xbf16>, vector<8x32xbf16>, vector<8x32xbf16>, vector<8x32xbf16>, vector<8x32xbf16>, vector<8x32xbf16>, vector<8x32xbf16> -> vector<8x512xbf16>
    %79 = tpu.concatenate %78, %77 in 1 : vector<8x512xbf16>, vector<8x32xbf16> -> vector<8x544xbf16>
    %c0_43 = arith.constant 0 : index
    %c0_44 = arith.constant 0 : index
    %80 = vector.load %arg7[%c0_43, %c0_44] : memref<544x32xbf16, #tpu.memory_space<vmem>>, vector<544x32xbf16>
    %cst_45 = arith.constant dense<0.000000e+00> : vector<8x32xf32>
    %81 = tpu.matmul %79, %80, %cst_45 {dimension_numbers = #tpu.dot_dimension_numbers<[1], [0], [0], [1], [0, 0, 1, 1], [], []>} : vector<8x544xbf16>, vector<544x32xbf16>, vector<8x32xf32> -> vector<8x32xf32>
    %c0_46 = arith.constant 0 : index
    %c0_47 = arith.constant 0 : index
    %82 = vector.load %arg8[%c0_46, %c0_47] : memref<1x32xf32, #tpu.memory_space<vmem>>, vector<1x32xf32>
    %83 = vector.broadcast %82 : vector<1x32xf32> to vector<8x32xf32>
    %84 = arith.mulf %81, %83 : vector<8x32xf32>
    %c0_48 = arith.constant 0 : index
    %c0_49 = arith.constant 0 : index
    %85 = vector.load %arg9[%c0_48, %c0_49] : memref<1x32xf32, #tpu.memory_space<vmem>>, vector<1x32xf32>
    %86 = vector.broadcast %85 : vector<1x32xf32> to vector<8x32xf32>
    %87 = arith.addf %84, %86 : vector<8x32xf32>
    %88 = arith.negf %87 : vector<8x32xf32>
    %89 = math.exp %88 : vector<8x32xf32>
    %cst_50 = arith.constant 1.000000e+00 : f32
    %90 = vector.broadcast %cst_50 : f32 to vector<8x32xf32>
    %91 = arith.addf %90, %89 : vector<8x32xf32>
    %92 = arith.divf %90, %91 : vector<8x32xf32>
    %93 = arith.mulf %87, %92 : vector<8x32xf32>
    %94 = arith.truncf %93 : vector<8x32xf32> to vector<8x32xbf16>
    %c0_51 = arith.constant 0 : index
    %c0_52 = arith.constant 0 : index
    %95 = vector.load %arg10[%c0_51, %c0_52] : memref<32x32xbf16, #tpu.memory_space<vmem>>, vector<32x32xbf16>
    %cst_53 = arith.constant dense<0.000000e+00> : vector<8x32xf32>
    %96 = tpu.matmul %94, %95, %cst_53 {dimension_numbers = #tpu.dot_dimension_numbers<[1], [0], [0], [1], [0, 0, 1, 1], [], []>} : vector<8x32xbf16>, vector<32x32xbf16>, vector<8x32xf32> -> vector<8x32xf32>
    %c0_54 = arith.constant 0 : index
    %c0_55 = arith.constant 0 : index
    %97 = vector.load %arg11[%c0_54, %c0_55] : memref<1x32xf32, #tpu.memory_space<vmem>>, vector<1x32xf32>
    %98 = vector.broadcast %97 : vector<1x32xf32> to vector<8x32xf32>
    %99 = arith.addf %96, %98 : vector<8x32xf32>
    %c0_56 = arith.constant 0 : index
    %c0_57 = arith.constant 0 : index
    %100 = vector.load %arg12[%c0_56, %c0_57] : memref<1x32xf32, #tpu.memory_space<vmem>>, vector<1x32xf32>
    %101 = vector.broadcast %100 : vector<1x32xf32> to vector<8x32xf32>
    %102 = arith.mulf %99, %101 : vector<8x32xf32>
    %103 = arith.addf %102, %5 : vector<8x32xf32>
    %c0_58 = arith.constant 0 : index
    %c0_59 = arith.constant 0 : index
    %104 = vector.load %arg13[%c0_58, %c0_59] : memref<1x32xf32, #tpu.memory_space<vmem>>, vector<1x32xf32>
    %c0_60 = arith.constant 0 : index
    %c0_61 = arith.constant 0 : index
    %105 = vector.load %arg14[%c0_60, %c0_61] : memref<1x32xf32, #tpu.memory_space<vmem>>, vector<1x32xf32>
    %cst_62 = arith.constant dense<0.000000e+00> : vector<8xf32>
    %106 = vector.multi_reduction <add>, %103, %cst_62 [1] : vector<8x32xf32> to vector<8xf32>
    %107 = vector.shape_cast %106 : vector<8xf32> to vector<8x1xf32>
    %cst_63 = arith.constant 3.200000e+01 : f32
    %108 = vector.broadcast %cst_63 : f32 to vector<8x1xf32>
    %109 = arith.divf %107, %108 : vector<8x1xf32>
    %110 = vector.broadcast %109 : vector<8x1xf32> to vector<8x32xf32>
    %111 = arith.subf %103, %110 : vector<8x32xf32>
    %112 = arith.mulf %111, %111 : vector<8x32xf32>
    %cst_64 = arith.constant dense<0.000000e+00> : vector<8xf32>
    %113 = vector.multi_reduction <add>, %112, %cst_64 [1] : vector<8x32xf32> to vector<8xf32>
    %114 = vector.shape_cast %113 : vector<8xf32> to vector<8x1xf32>
    %cst_65 = arith.constant 3.200000e+01 : f32
    %115 = vector.broadcast %cst_65 : f32 to vector<8x1xf32>
    %116 = arith.divf %114, %115 : vector<8x1xf32>
    %117 = vector.broadcast %109 : vector<8x1xf32> to vector<8x32xf32>
    %118 = arith.subf %103, %117 : vector<8x32xf32>
    %cst_66 = arith.constant 9.99999974E-6 : f32
    %119 = vector.broadcast %cst_66 : f32 to vector<8x1xf32>
    %120 = arith.addf %116, %119 : vector<8x1xf32>
    %121 = math.rsqrt %120 : vector<8x1xf32>
    %122 = vector.broadcast %121 : vector<8x1xf32> to vector<8x32xf32>
    %123 = arith.mulf %118, %122 : vector<8x32xf32>
    %124 = vector.broadcast %104 : vector<1x32xf32> to vector<8x32xf32>
    %125 = arith.mulf %123, %124 : vector<8x32xf32>
    %126 = vector.broadcast %105 : vector<1x32xf32> to vector<8x32xf32>
    %127 = arith.addf %125, %126 : vector<8x32xf32>
    %128 = arith.truncf %127 : vector<8x32xf32> to vector<8x32xbf16>
    %c0_67 = arith.constant 0 : index
    %c0_68 = arith.constant 0 : index
    %129 = vector.load %arg15[%c0_67, %c0_68] : memref<32x128xbf16, #tpu.memory_space<vmem>>, vector<32x128xbf16>
    %cst_69 = arith.constant dense<0.000000e+00> : vector<8x128xf32>
    %130 = tpu.matmul %128, %129, %cst_69 {dimension_numbers = #tpu.dot_dimension_numbers<[1], [0], [0], [1], [0, 0, 1, 1], [], []>} : vector<8x32xbf16>, vector<32x128xbf16>, vector<8x128xf32> -> vector<8x128xf32>
    %c0_70 = arith.constant 0 : index
    %c0_71 = arith.constant 0 : index
    %131 = vector.load %arg16[%c0_70, %c0_71] : memref<1x128xf32, #tpu.memory_space<vmem>>, vector<1x128xf32>
    %132 = vector.broadcast %131 : vector<1x128xf32> to vector<8x128xf32>
    %133 = arith.addf %130, %132 : vector<8x128xf32>
    %134 = vector.extract_strided_slice %133 {offsets = [0, 0], sizes = [8, 64], strides = [1, 1]} : vector<8x128xf32> to vector<8x64xf32>
    %135 = vector.extract_strided_slice %133 {offsets = [0, 64], sizes = [8, 64], strides = [1, 1]} : vector<8x128xf32> to vector<8x64xf32>
    %136 = arith.negf %135 : vector<8x64xf32>
    %137 = math.exp %136 : vector<8x64xf32>
    %cst_72 = arith.constant 1.000000e+00 : f32
    %138 = vector.broadcast %cst_72 : f32 to vector<8x64xf32>
    %139 = arith.addf %138, %137 : vector<8x64xf32>
    %140 = arith.divf %138, %139 : vector<8x64xf32>
    %141 = arith.mulf %135, %140 : vector<8x64xf32>
    %142 = arith.mulf %134, %141 : vector<8x64xf32>
    %143 = arith.truncf %142 : vector<8x64xf32> to vector<8x64xbf16>
    %c0_73 = arith.constant 0 : index
    %c0_74 = arith.constant 0 : index
    %144 = vector.load %arg17[%c0_73, %c0_74] : memref<64x32xbf16, #tpu.memory_space<vmem>>, vector<64x32xbf16>
    %cst_75 = arith.constant dense<0.000000e+00> : vector<8x32xf32>
    %145 = tpu.matmul %143, %144, %cst_75 {dimension_numbers = #tpu.dot_dimension_numbers<[1], [0], [0], [1], [0, 0, 1, 1], [], []>} : vector<8x64xbf16>, vector<64x32xbf16>, vector<8x32xf32> -> vector<8x32xf32>
    %c0_76 = arith.constant 0 : index
    %c0_77 = arith.constant 0 : index
    %146 = vector.load %arg18[%c0_76, %c0_77] : memref<1x32xf32, #tpu.memory_space<vmem>>, vector<1x32xf32>
    %147 = vector.broadcast %146 : vector<1x32xf32> to vector<8x32xf32>
    %148 = arith.addf %145, %147 : vector<8x32xf32>
    %c0_78 = arith.constant 0 : index
    %c0_79 = arith.constant 0 : index
    %149 = vector.load %arg19[%c0_78, %c0_79] : memref<1x32xf32, #tpu.memory_space<vmem>>, vector<1x32xf32>
    %150 = vector.broadcast %149 : vector<1x32xf32> to vector<8x32xf32>
    %151 = arith.mulf %148, %150 : vector<8x32xf32>
    %152 = arith.addf %103, %151 : vector<8x32xf32>
    %c0_80 = arith.constant 0 : index
    %c0_81 = arith.constant 0 : index
    %c0_82 = arith.constant 0 : index
    %153 = vector.load %arg20[%c0_80, %c0_81, %c0_82] : memref<1x8x32xf32, #tpu.memory_space<vmem>>, vector<1x8x32xf32>
    %154 = vector.shape_cast %153 : vector<1x8x32xf32> to vector<8x32xf32>
    %155 = vector.shape_cast %152 : vector<8x32xf32> to vector<1x8x32xf32>
    tpu.vector_store %arg20[%c0_80, %c0_81, %c0_82], %155 {strides = array<i32>} : memref<1x8x32xf32, #tpu.memory_space<vmem>>, vector<1x8x32xf32>,
    return
  }
  func.func @transform_0(%arg0: i32, %arg1: i32) -> (i32, i32, i32, i32) {
    %c0_i32 = arith.constant 0 : i32
    %c0_i32_0 = arith.constant 0 : i32
    %c0_i32_1 = arith.constant 0 : i32
    return %arg0, %arg1, %c0_i32, %c0_i32_0 : i32, i32, i32, i32
  }
  func.func @transform_1(%arg0: i32, %arg1: i32) -> (i32, i32) {
    %c0_i32 = arith.constant 0 : i32
    %c0_i32_0 = arith.constant 0 : i32
    %c0_i32_1 = arith.constant 0 : i32
    return %c0_i32, %c0_i32_0 : i32, i32
  }
  func.func @transform_2(%arg0: i32, %arg1: i32) -> (i32, i32) {
    %c0_i32 = arith.constant 0 : i32
    %c0_i32_0 = arith.constant 0 : i32
    %c0_i32_1 = arith.constant 0 : i32
    return %c0_i32, %c0_i32_0 : i32, i32
  }
  func.func @transform_3(%arg0: i32, %arg1: i32) -> (i32, i32) {
    %c0_i32 = arith.constant 0 : i32
    %c0_i32_0 = arith.constant 0 : i32
    %c0_i32_1 = arith.constant 0 : i32
    return %c0_i32, %c0_i32_0 : i32, i32
  }
  func.func @transform_4(%arg0: i32, %arg1: i32) -> (i32, i32) {
    %c0_i32 = arith.constant 0 : i32
    %c0_i32_0 = arith.constant 0 : i32
    %c0_i32_1 = arith.constant 0 : i32
    return %c0_i32, %c0_i32_0 : i32, i32
  }
  func.func @transform_5(%arg0: i32, %arg1: i32) -> (i32, i32) {
    %c0_i32 = arith.constant 0 : i32
    %c0_i32_0 = arith.constant 0 : i32
    %c0_i32_1 = arith.constant 0 : i32
    return %c0_i32, %c0_i32_0 : i32, i32
  }
  func.func @transform_6(%arg0: i32, %arg1: i32) -> (i32, i32) {
    %c0_i32 = arith.constant 0 : i32
    %c0_i32_0 = arith.constant 0 : i32
    %c0_i32_1 = arith.constant 0 : i32
    return %c0_i32, %c0_i32_0 : i32, i32
  }
  func.func @transform_7(%arg0: i32, %arg1: i32) -> (i32, i32) {
    %c0_i32 = arith.constant 0 : i32
    %c0_i32_0 = arith.constant 0 : i32
    %c0_i32_1 = arith.constant 0 : i32
    return %c0_i32, %c0_i32_0 : i32, i32
  }
  func.func @transform_8(%arg0: i32, %arg1: i32) -> (i32, i32) {
    %c0_i32 = arith.constant 0 : i32
    %c0_i32_0 = arith.constant 0 : i32
    %c0_i32_1 = arith.constant 0 : i32
    return %c0_i32, %c0_i32_0 : i32, i32
  }
  func.func @transform_9(%arg0: i32, %arg1: i32) -> (i32, i32) {
    %c0_i32 = arith.constant 0 : i32
    %c0_i32_0 = arith.constant 0 : i32
    %c0_i32_1 = arith.constant 0 : i32
    return %c0_i32, %c0_i32_0 : i32, i32
  }
  func.func @transform_10(%arg0: i32, %arg1: i32) -> (i32, i32) {
    %c0_i32 = arith.constant 0 : i32
    %c0_i32_0 = arith.constant 0 : i32
    %c0_i32_1 = arith.constant 0 : i32
    return %c0_i32, %c0_i32_0 : i32, i32
  }
  func.func @transform_11(%arg0: i32, %arg1: i32) -> (i32, i32) {
    %c0_i32 = arith.constant 0 : i32
    %c0_i32_0 = arith.constant 0 : i32
    %c0_i32_1 = arith.constant 0 : i32
    return %c0_i32, %c0_i32_0 : i32, i32
  }
  func.func @transform_12(%arg0: i32, %arg1: i32) -> (i32, i32) {
    %c0_i32 = arith.constant 0 : i32
    %c0_i32_0 = arith.constant 0 : i32
    %c0_i32_1 = arith.constant 0 : i32
    return %c0_i32, %c0_i32_0 : i32, i32
  }
  func.func @transform_13(%arg0: i32, %arg1: i32) -> (i32, i32) {
    %c0_i32 = arith.constant 0 : i32
    %c0_i32_0 = arith.constant 0 : i32
    %c0_i32_1 = arith.constant 0 : i32
    return %c0_i32, %c0_i32_0 : i32, i32
  }
  func.func @transform_14(%arg0: i32, %arg1: i32) -> (i32, i32) {
    %c0_i32 = arith.constant 0 : i32
    %c0_i32_0 = arith.constant 0 : i32
    %c0_i32_1 = arith.constant 0 : i32
    return %c0_i32, %c0_i32_0 : i32, i32
  }
  func.func @transform_15(%arg0: i32, %arg1: i32) -> (i32, i32) {
    %c0_i32 = arith.constant 0 : i32
    %c0_i32_0 = arith.constant 0 : i32
    %c0_i32_1 = arith.constant 0 : i32
    return %c0_i32, %c0_i32_0 : i32, i32
  }
  func.func @transform_16(%arg0: i32, %arg1: i32) -> (i32, i32) {
    %c0_i32 = arith.constant 0 : i32
    %c0_i32_0 = arith.constant 0 : i32
    %c0_i32_1 = arith.constant 0 : i32
    return %c0_i32, %c0_i32_0 : i32, i32
  }
  func.func @transform_17(%arg0: i32, %arg1: i32) -> (i32, i32) {
    %c0_i32 = arith.constant 0 : i32
    %c0_i32_0 = arith.constant 0 : i32
    %c0_i32_1 = arith.constant 0 : i32
    return %c0_i32, %c0_i32_0 : i32, i32
  }
  func.func @transform_18(%arg0: i32, %arg1: i32) -> (i32, i32, i32) {
    %c0_i32 = arith.constant 0 : i32
    %c0_i32_0 = arith.constant 0 : i32
    return %arg0, %arg1, %c0_i32 : i32, i32, i32
  }
}

</mosaic_0001>

<llo_original>
// kernel: tpu_custom_call.1
$region0: #{tpu_custom_call.1}
  #allocation0 [shape = 'u32[]', space=smem, size = 0x4, offset = 0x4, fixed_abs, tag = 'smem constant byte address 0x4 - core index']
  #allocation1 [shape = 'u32[72,128]{1,0:T(1,128)}', space=vmem, size = 0x9000, scoped, tag = 'internal scratch']
  #allocation2 [shape = 'bf16[24,32]{1,0:T(8,128)(2,1)}', space=vmem, size = 0x1800, scoped, tag = 'scratch operand']
  %s0 = inlined_call_operand.vmem [shape: bf16[2,2,24,32], index: 0, kind: input, shape index: {}]
  %s1 = inlined_call_operand.vmem [shape: f32[1,32], index: 1, kind: input, shape index: {}]
  %s2 = inlined_call_operand.vmem [shape: f32[1,32], index: 2, kind: input, shape index: {}]
  %s3 = inlined_call_operand.vmem [shape: bf16[32,64], index: 3, kind: input, shape index: {}]
  %s4 = inlined_call_operand.vmem [shape: f32[1,64], index: 4, kind: input, shape index: {}]
  %s5 = inlined_call_operand.vmem [shape: bf16[544,32], index: 5, kind: input, shape index: {}]
  %s6 = inlined_call_operand.vmem [shape: f32[1,32], index: 6, kind: input, shape index: {}]
  %s7 = inlined_call_operand.vmem [shape: f32[1,32], index: 7, kind: input, shape index: {}]
  %s8 = inlined_call_operand.vmem [shape: bf16[32,32], index: 8, kind: input, shape index: {}]
  %s9 = inlined_call_operand.vmem [shape: f32[1,32], index: 9, kind: input, shape index: {}]
  %s10 = inlined_call_operand.vmem [shape: f32[1,32], index: 10, kind: input, shape index: {}]
  %s11 = inlined_call_operand.vmem [shape: f32[1,32], index: 11, kind: input, shape index: {}]
  %s12 = inlined_call_operand.vmem [shape: f32[1,32], index: 12, kind: input, shape index: {}]
  %s13 = inlined_call_operand.vmem [shape: bf16[32,128], index: 13, kind: input, shape index: {}]
  %s14 = inlined_call_operand.vmem [shape: f32[1,128], index: 14, kind: input, shape index: {}]
  %s15 = inlined_call_operand.vmem [shape: bf16[64,32], index: 15, kind: input, shape index: {}]
  %s16 = inlined_call_operand.vmem [shape: f32[1,32], index: 16, kind: input, shape index: {}]
  %s17 = inlined_call_operand.vmem [shape: f32[1,32], index: 17, kind: input, shape index: {}]
  %s18 = inlined_call_operand.hbm [shape: f32[2,16,32], index: 18, kind: output, shape index: {}]
  %s19 = sld [smem:[#allocation0]]
  $region105: #{tpu_custom_call.1} parent=0
    _
  %s21 = ssub.s32 1, %s19
  %s22 = scalar_select 0, %s21, %s19
  $region1: #{tpu_custom_call.1} parent=0
    #allocation3 [shape = 'u8[8192]{0}', space=vmem, size = 0x2000, scoped, tag = 'output window, operand 0']
    #allocation4 [shape = 's32[2]{0}', space=sflag, size = 0x8, scoped, tag = 'scoped memory for tpu_custom_call.1']
    %23 = vsyncpa [#allocation4], 0
    %s24 = scalar_lea.sflag [#allocation4], 1
    %25 = vsyncpa %s24, 0
    loop: start=0, step=1, limit=6
    $region2: #{tpu_custom_call.1} parent=1 // loop_pre_header
      _
    $region3: #{tpu_custom_call.1} parent=1 // loop_header
      %s27 = sphi 0, %s31
      %p28 = scmp.ge.s32.totalorder %s27, 6
      %s34 = sphi 0, %s46
      %s35 = sphi 0, %s42
      %s36 = sphi 0, %s34
      %s37 = sphi 0, %s35
      %s38 = sphi 0, %s36
      %s39 = sphi 0, %s37
      %s51 = sphi 0, %s53
      %s54 = sphi 0, %s51
      %s55 = sphi 0, %s54
      %s71 = sphi 0, %s55
      %s75 = sphi 0, %s75
      %s77 = sphi 0, %s75
      %s78 = sphi 0, %s77
      %s92 = sphi 0, %s78
      %s96 = sphi 0, %s96
      %s98 = sphi 0, %s96
      %s99 = sphi 0, %s98
      %s113 = sphi 0, %s99
      %s117 = sphi 0, %s117
      %s119 = sphi 0, %s117
      %s120 = sphi 0, %s119
      %s134 = sphi 0, %s120
      %s138 = sphi 0, %s138
      %s140 = sphi 0, %s138
      %s141 = sphi 0, %s140
      %s155 = sphi 0, %s141
      %s159 = sphi 0, %s159
      %s161 = sphi 0, %s159
      %s162 = sphi 0, %s161
      %s176 = sphi 0, %s162
      %s180 = sphi 0, %s180
      %s182 = sphi 0, %s180
      %s183 = sphi 0, %s182
      %s197 = sphi 0, %s183
      %s201 = sphi 0, %s201
      %s203 = sphi 0, %s201
      %s204 = sphi 0, %s203
      %s218 = sphi 0, %s204
      %s222 = sphi 0, %s222
      %s224 = sphi 0, %s222
      %s225 = sphi 0, %s224
      %s239 = sphi 0, %s225
      %s243 = sphi 0, %s243
      %s245 = sphi 0, %s243
      %s246 = sphi 0, %s245
      %s260 = sphi 0, %s246
      %s264 = sphi 0, %s264
      %s266 = sphi 0, %s264
      %s267 = sphi 0, %s266
      %s281 = sphi 0, %s267
      %s285 = sphi 0, %s285
      %s287 = sphi 0, %s285
      %s288 = sphi 0, %s287
      %s302 = sphi 0, %s288
      %s306 = sphi 0, %s306
      %s308 = sphi 0, %s306
      %s309 = sphi 0, %s308
      %s323 = sphi 0, %s309
      %s327 = sphi 0, %s327
      %s329 = sphi 0, %s327
      %s330 = sphi 0, %s329
      %s344 = sphi 0, %s330
      %s348 = sphi 0, %s348
      %s350 = sphi 0, %s348
      %s351 = sphi 0, %s350
      %s365 = sphi 0, %s351
      %s369 = sphi 0, %s369
      %s371 = sphi 0, %s369
      %s372 = sphi 0, %s371
      %s386 = sphi 0, %s372
      %s390 = sphi 0, %s390
      %s392 = sphi 0, %s390
      %s393 = sphi 0, %s392
      %s407 = sphi 0, %s393
      %s411 = sphi 0, %s411
      %s413 = sphi 0, %s411
      %s414 = sphi 0, %s413
      %s428 = sphi 0, %s414
      %s436 = sphi 0, %s438
      %s439 = sphi 0, %s436
      %s440 = sphi 0, %s439
      %s456 = sphi 0, %s440
    $region4: #{tpu_custom_call.1} parent=1 // loop_header_branch
      %30 = sbr.rel (%p28) target = $region8
    $region5: #{tpu_custom_call.1} parent=1 // loop_body
      %s32 = ssub.s32 %s27, 1
      %s33 = ssub.s32 %s27, 2
      %s40 = sadd.s32 1, %s35
      %p41 = scmp.ge.s32.totalorder %s40, 2
      %s42 = scalar_select %p41, 0, %s40
      %s43 = sadd.s32 1, %s34
      %s44 = scalar_select %p41, %s43, %s34
      %p45 = scmp.ge.s32.totalorder %s44, 2
      %s46 = scalar_select %p45, 0, %s44
      %s47 = ssub.s32 %s34, %s46
      %s48 = ssub.s32 %s35, %s42
      %s49 = sor.u32 %s47, %s48
      %p50 = scmp.eq.s32.totalorder %s49, 0
      %s52 = sadd.s32 %s51, 1
      %s53 = scalar_select %p50, %s51, %s52
      %p56 = pneg %p50
      %p57 = scmp.eq.s32.totalorder %s27, 3
      %p58 = por %p56, %p57
      %p59 = scmp.ne.s32.totalorder %s51, %s54
      %p60 = scmp.eq.s32.totalorder %s27, 0
      %p61 = por %p59, %p60
      %p62 = scmp.ne.s32.totalorder %s51, %s54
      %p63 = scmp.eq.s32.totalorder %s32, 3
      %p64 = por %p62, %p63
      %p65 = scmp.ne.s32.totalorder %s54, %s55
      %p66 = scmp.eq.s32.totalorder %s32, 0
      %p67 = por %p65, %p66
      %p68 = scmp.ne.s32.totalorder %s54, %s55
      %p69 = scmp.eq.s32.totalorder %s33, 3
      %p70 = por %p68, %p69
      %p72 = scmp.ne.s32.totalorder %s55, %s71
      %p73 = scmp.eq.s32.totalorder %s33, 0
      %p74 = por %p72, %p73
      %s76 = sadd.s32 %s75, 1
      %p79 = scmp.eq.s32.totalorder %s27, 3
      %p80 = scmp.ne.s32.totalorder %s75, %s77
      %p81 = scmp.eq.s32.totalorder %s27, 0
      %p82 = por %p80, %p81
      %p83 = scmp.ne.s32.totalorder %s75, %s77
      %p84 = scmp.eq.s32.totalorder %s32, 3
      %p85 = por %p83, %p84
      %p86 = scmp.ne.s32.totalorder %s77, %s78
      %p87 = scmp.eq.s32.totalorder %s32, 0
      %p88 = por %p86, %p87
      %p89 = scmp.ne.s32.totalorder %s77, %s78
      %p90 = scmp.eq.s32.totalorder %s33, 3
      %p91 = por %p89, %p90
      %p93 = scmp.ne.s32.totalorder %s78, %s92
      %p94 = scmp.eq.s32.totalorder %s33, 0
      %p95 = por %p93, %p94
      %s97 = sadd.s32 %s96, 1
      %p100 = scmp.eq.s32.totalorder %s27, 3
      %p101 = scmp.ne.s32.totalorder %s96, %s98
      %p102 = scmp.eq.s32.totalorder %s27, 0
      %p103 = por %p101, %p102
      %p104 = scmp.ne.s32.totalorder %s96, %s98
      %p105 = scmp.eq.s32.totalorder %s32, 3
      %p106 = por %p104, %p105
      %p107 = scmp.ne.s32.totalorder %s98, %s99
      %p108 = scmp.eq.s32.totalorder %s32, 0
      %p109 = por %p107, %p108
      %p110 = scmp.ne.s32.totalorder %s98, %s99
      %p111 = scmp.eq.s32.totalorder %s33, 3
      %p112 = por %p110, %p111
      %p114 = scmp.ne.s32.totalorder %s99, %s113
      %p115 = scmp.eq.s32.totalorder %s33, 0
      %p116 = por %p114, %p115
      %s118 = sadd.s32 %s117, 1
      %p121 = scmp.eq.s32.totalorder %s27, 3
      %p122 = scmp.ne.s32.totalorder %s117, %s119
      %p123 = scmp.eq.s32.totalorder %s27, 0
      %p124 = por %p122, %p123
      %p125 = scmp.ne.s32.totalorder %s117, %s119
      %p126 = scmp.eq.s32.totalorder %s32, 3
      %p127 = por %p125, %p126
      %p128 = scmp.ne.s32.totalorder %s119, %s120
      %p129 = scmp.eq.s32.totalorder %s32, 0
      %p130 = por %p128, %p129
      %p131 = scmp.ne.s32.totalorder %s119, %s120
      %p132 = scmp.eq.s32.totalorder %s33, 3
      %p133 = por %p131, %p132
      %p135 = scmp.ne.s32.totalorder %s120, %s134
      %p136 = scmp.eq.s32.totalorder %s33, 0
      %p137 = por %p135, %p136
      %s139 = sadd.s32 %s138, 1
      %p142 = scmp.eq.s32.totalorder %s27, 3
      %p143 = scmp.ne.s32.totalorder %s138, %s140
      %p144 = scmp.eq.s32.totalorder %s27, 0
      %p145 = por %p143, %p144
      %p146 = scmp.ne.s32.totalorder %s138, %s140
      %p147 = scmp.eq.s32.totalorder %s32, 3
      %p148 = por %p146, %p147
      %p149 = scmp.ne.s32.totalorder %s140, %s141
      %p150 = scmp.eq.s32.totalorder %s32, 0
      %p151 = por %p149, %p150
      %p152 = scmp.ne.s32.totalorder %s140, %s141
      %p153 = scmp.eq.s32.totalorder %s33, 3
      %p154 = por %p152, %p153
      %p156 = scmp.ne.s32.totalorder %s141, %s155
      %p157 = scmp.eq.s32.totalorder %s33, 0
      %p158 = por %p156, %p157
      %s160 = sadd.s32 %s159, 1
      %p163 = scmp.eq.s32.totalorder %s27, 3
      %p164 = scmp.ne.s32.totalorder %s159, %s161
      %p165 = scmp.eq.s32.totalorder %s27, 0
      %p166 = por %p164, %p165
      %p167 = scmp.ne.s32.totalorder %s159, %s161
      %p168 = scmp.eq.s32.totalorder %s32, 3
      %p169 = por %p167, %p168
      %p170 = scmp.ne.s32.totalorder %s161, %s162
      %p171 = scmp.eq.s32.totalorder %s32, 0
      %p172 = por %p170, %p171
      %p173 = scmp.ne.s32.totalorder %s161, %s162
      %p174 = scmp.eq.s32.totalorder %s33, 3
      %p175 = por %p173, %p174
      %p177 = scmp.ne.s32.totalorder %s162, %s176
      %p178 = scmp.eq.s32.totalorder %s33, 0
      %p179 = por %p177, %p178
      %s181 = sadd.s32 %s180, 1
      %p184 = scmp.eq.s32.totalorder %s27, 3
      %p185 = scmp.ne.s32.totalorder %s180, %s182
      %p186 = scmp.eq.s32.totalorder %s27, 0
      %p187 = por %p185, %p186
      %p188 = scmp.ne.s32.totalorder %s180, %s182
      %p189 = scmp.eq.s32.totalorder %s32, 3
      %p190 = por %p188, %p189
      %p191 = scmp.ne.s32.totalorder %s182, %s183
      %p192 = scmp.eq.s32.totalorder %s32, 0
      %p193 = por %p191, %p192
      %p194 = scmp.ne.s32.totalorder %s182, %s183
      %p195 = scmp.eq.s32.totalorder %s33, 3
      %p196 = por %p194, %p195
      %p198 = scmp.ne.s32.totalorder %s183, %s197
      %p199 = scmp.eq.s32.totalorder %s33, 0
      %p200 = por %p198, %p199
      %s202 = sadd.s32 %s201, 1
      %p205 = scmp.eq.s32.totalorder %s27, 3
      %p206 = scmp.ne.s32.totalorder %s201, %s203
      %p207 = scmp.eq.s32.totalorder %s27, 0
      %p208 = por %p206, %p207
      %p209 = scmp.ne.s32.totalorder %s201, %s203
      %p210 = scmp.eq.s32.totalorder %s32, 3
      %p211 = por %p209, %p210
      %p212 = scmp.ne.s32.totalorder %s203, %s204
      %p213 = scmp.eq.s32.totalorder %s32, 0
      %p214 = por %p212, %p213
      %p215 = scmp.ne.s32.totalorder %s203, %s204
      %p216 = scmp.eq.s32.totalorder %s33, 3
      %p217 = por %p215, %p216
      %p219 = scmp.ne.s32.totalorder %s204, %s218
      %p220 = scmp.eq.s32.totalorder %s33, 0
      %p221 = por %p219, %p220
      %s223 = sadd.s32 %s222, 1
      %p226 = scmp.eq.s32.totalorder %s27, 3
      %p227 = scmp.ne.s32.totalorder %s222, %s224
      %p228 = scmp.eq.s32.totalorder %s27, 0
      %p229 = por %p227, %p228
      %p230 = scmp.ne.s32.totalorder %s222, %s224
      %p231 = scmp.eq.s32.totalorder %s32, 3
      %p232 = por %p230, %p231
      %p233 = scmp.ne.s32.totalorder %s224, %s225
      %p234 = scmp.eq.s32.totalorder %s32, 0
      %p235 = por %p233, %p234
      %p236 = scmp.ne.s32.totalorder %s224, %s225
      %p237 = scmp.eq.s32.totalorder %s33, 3
      %p238 = por %p236, %p237
      %p240 = scmp.ne.s32.totalorder %s225, %s239
      %p241 = scmp.eq.s32.totalorder %s33, 0
      %p242 = por %p240, %p241
      %s244 = sadd.s32 %s243, 1
      %p247 = scmp.eq.s32.totalorder %s27, 3
      %p248 = scmp.ne.s32.totalorder %s243, %s245
      %p249 = scmp.eq.s32.totalorder %s27, 0
      %p250 = por %p248, %p249
      %p251 = scmp.ne.s32.totalorder %s243, %s245
      %p252 = scmp.eq.s32.totalorder %s32, 3
      %p253 = por %p251, %p252
      %p254 = scmp.ne.s32.totalorder %s245, %s246
      %p255 = scmp.eq.s32.totalorder %s32, 0
      %p256 = por %p254, %p255
      %p257 = scmp.ne.s32.totalorder %s245, %s246
      %p258 = scmp.eq.s32.totalorder %s33, 3
      %p259 = por %p257, %p258
      %p261 = scmp.ne.s32.totalorder %s246, %s260
      %p262 = scmp.eq.s32.totalorder %s33, 0
      %p263 = por %p261, %p262
      %s265 = sadd.s32 %s264, 1
      %p268 = scmp.eq.s32.totalorder %s27, 3
      %p269 = scmp.ne.s32.totalorder %s264, %s266
      %p270 = scmp.eq.s32.totalorder %s27, 0
      %p271 = por %p269, %p270
      %p272 = scmp.ne.s32.totalorder %s264, %s266
      %p273 = scmp.eq.s32.totalorder %s32, 3
      %p274 = por %p272, %p273
      %p275 = scmp.ne.s32.totalorder %s266, %s267
      %p276 = scmp.eq.s32.totalorder %s32, 0
      %p277 = por %p275, %p276
      %p278 = scmp.ne.s32.totalorder %s266, %s267
      %p279 = scmp.eq.s32.totalorder %s33, 3
      %p280 = por %p278, %p279
      %p282 = scmp.ne.s32.totalorder %s267, %s281
      %p283 = scmp.eq.s32.totalorder %s33, 0
      %p284 = por %p282, %p283
      %s286 = sadd.s32 %s285, 1
      %p289 = scmp.eq.s32.totalorder %s27, 3
      %p290 = scmp.ne.s32.totalorder %s285, %s287
      %p291 = scmp.eq.s32.totalorder %s27, 0
      %p292 = por %p290, %p291
      %p293 = scmp.ne.s32.totalorder %s285, %s287
      %p294 = scmp.eq.s32.totalorder %s32, 3
      %p295 = por %p293, %p294
      %p296 = scmp.ne.s32.totalorder %s287, %s288
      %p297 = scmp.eq.s32.totalorder %s32, 0
      %p298 = por %p296, %p297
      %p299 = scmp.ne.s32.totalorder %s287, %s288
      %p300 = scmp.eq.s32.totalorder %s33, 3
      %p301 = por %p299, %p300
      %p303 = scmp.ne.s32.totalorder %s288, %s302
      %p304 = scmp.eq.s32.totalorder %s33, 0
      %p305 = por %p303, %p304
      %s307 = sadd.s32 %s306, 1
      %p310 = scmp.eq.s32.totalorder %s27, 3
      %p311 = scmp.ne.s32.totalorder %s306, %s308
      %p312 = scmp.eq.s32.totalorder %s27, 0
      %p313 = por %p311, %p312
      %p314 = scmp.ne.s32.totalorder %s306, %s308
      %p315 = scmp.eq.s32.totalorder %s32, 3
      %p316 = por %p314, %p315
      %p317 = scmp.ne.s32.totalorder %s308, %s309
      %p318 = scmp.eq.s32.totalorder %s32, 0
      %p319 = por %p317, %p318
      %p320 = scmp.ne.s32.totalorder %s308, %s309
      %p321 = scmp.eq.s32.totalorder %s33, 3
      %p322 = por %p320, %p321
      %p324 = scmp.ne.s32.totalorder %s309, %s323
      %p325 = scmp.eq.s32.totalorder %s33, 0
      %p326 = por %p324, %p325
      %s328 = sadd.s32 %s327, 1
      %p331 = scmp.eq.s32.totalorder %s27, 3
      %p332 = scmp.ne.s32.totalorder %s327, %s329
      %p333 = scmp.eq.s32.totalorder %s27, 0
      %p334 = por %p332, %p333
      %p335 = scmp.ne.s32.totalorder %s327, %s329
      %p336 = scmp.eq.s32.totalorder %s32, 3
      %p337 = por %p335, %p336
      %p338 = scmp.ne.s32.totalorder %s329, %s330
      %p339 = scmp.eq.s32.totalorder %s32, 0
      %p340 = por %p338, %p339
      %p341 = scmp.ne.s32.totalorder %s329, %s330
      %p342 = scmp.eq.s32.totalorder %s33, 3
      %p343 = por %p341, %p342
      %p345 = scmp.ne.s32.totalorder %s330, %s344
      %p346 = scmp.eq.s32.totalorder %s33, 0
      %p347 = por %p345, %p346
      %s349 = sadd.s32 %s348, 1
      %p352 = scmp.eq.s32.totalorder %s27, 3
      %p353 = scmp.ne.s32.totalorder %s348, %s350
      %p354 = scmp.eq.s32.totalorder %s27, 0
      %p355 = por %p353, %p354
      %p356 = scmp.ne.s32.totalorder %s348, %s350
      %p357 = scmp.eq.s32.totalorder %s32, 3
      %p358 = por %p356, %p357
      %p359 = scmp.ne.s32.totalorder %s350, %s351
      %p360 = scmp.eq.s32.totalorder %s32, 0
      %p361 = por %p359, %p360
      %p362 = scmp.ne.s32.totalorder %s350, %s351
      %p363 = scmp.eq.s32.totalorder %s33, 3
      %p364 = por %p362, %p363
      %p366 = scmp.ne.s32.totalorder %s351, %s365
      %p367 = scmp.eq.s32.totalorder %s33, 0
      %p368 = por %p366, %p367
      %s370 = sadd.s32 %s369, 1
      %p373 = scmp.eq.s32.totalorder %s27, 3
      %p374 = scmp.ne.s32.totalorder %s369, %s371
      %p375 = scmp.eq.s32.totalorder %s27, 0
      %p376 = por %p374, %p375
      %p377 = scmp.ne.s32.totalorder %s369, %s371
      %p378 = scmp.eq.s32.totalorder %s32, 3
      %p379 = por %p377, %p378
      %p380 = scmp.ne.s32.totalorder %s371, %s372
      %p381 = scmp.eq.s32.totalorder %s32, 0
      %p382 = por %p380, %p381
      %p383 = scmp.ne.s32.totalorder %s371, %s372
      %p384 = scmp.eq.s32.totalorder %s33, 3
      %p385 = por %p383, %p384
      %p387 = scmp.ne.s32.totalorder %s372, %s386
      %p388 = scmp.eq.s32.totalorder %s33, 0
      %p389 = por %p387, %p388
      %s391 = sadd.s32 %s390, 1
      %p394 = scmp.eq.s32.totalorder %s27, 3
      %p395 = scmp.ne.s32.totalorder %s390, %s392
      %p396 = scmp.eq.s32.totalorder %s27, 0
      %p397 = por %p395, %p396
      %p398 = scmp.ne.s32.totalorder %s390, %s392
      %p399 = scmp.eq.s32.totalorder %s32, 3
      %p400 = por %p398, %p399
      %p401 = scmp.ne.s32.totalorder %s392, %s393
      %p402 = scmp.eq.s32.totalorder %s32, 0
      %p403 = por %p401, %p402
      %p404 = scmp.ne.s32.totalorder %s392, %s393
      %p405 = scmp.eq.s32.totalorder %s33, 3
      %p406 = por %p404, %p405
      %p408 = scmp.ne.s32.totalorder %s393, %s407
      %p409 = scmp.eq.s32.totalorder %s33, 0
      %p410 = por %p408, %p409
      %s412 = sadd.s32 %s411, 1
      %p415 = scmp.eq.s32.totalorder %s27, 3
      %p416 = scmp.ne.s32.totalorder %s411, %s413
      %p417 = scmp.eq.s32.totalorder %s27, 0
      %p418 = por %p416, %p417
      %p419 = scmp.ne.s32.totalorder %s411, %s413
      %p420 = scmp.eq.s32.totalorder %s32, 3
      %p421 = por %p419, %p420
      %p422 = scmp.ne.s32.totalorder %s413, %s414
      %p423 = scmp.eq.s32.totalorder %s32, 0
      %p424 = por %p422, %p423
      %p425 = scmp.ne.s32.totalorder %s413, %s414
      %p426 = scmp.eq.s32.totalorder %s33, 3
      %p427 = por %p425, %p426
      %p429 = scmp.ne.s32.totalorder %s414, %s428
      %p430 = scmp.eq.s32.totalorder %s33, 0
      %p431 = por %p429, %p430
      %s432 = ssub.s32 %s34, %s46
      %s433 = ssub.s32 %s35, %s42
      %s434 = sor.u32 %s432, %s433
      %p435 = scmp.eq.s32.totalorder %s434, 0
      %s437 = sadd.s32 %s436, 1
      %s438 = scalar_select %p435, %s436, %s437
      %p441 = pneg %p435
      %p442 = scmp.eq.s32.totalorder %s27, 3
      %p443 = por %p441, %p442
      %p444 = scmp.ne.s32.totalorder %s436, %s439
      %p445 = scmp.eq.s32.totalorder %s27, 0
      %p446 = por %p444, %p445
      %p447 = scmp.ne.s32.totalorder %s436, %s439
      %p448 = scmp.eq.s32.totalorder %s32, 3
      %p449 = por %p447, %p448
      %p450 = scmp.ne.s32.totalorder %s439, %s440
      %p451 = scmp.eq.s32.totalorder %s32, 0
      %p452 = por %p450, %p451
      %p453 = scmp.ne.s32.totalorder %s439, %s440
      %p454 = scmp.eq.s32.totalorder %s33, 3
      %p455 = por %p453, %p454
      %p457 = scmp.ne.s32.totalorder %s440, %s456
      %p458 = scmp.eq.s32.totalorder %s33, 0
      %p459 = por %p457, %p458
      %p460 = scmp.le.s32.totalorder 1, %s27
      %p461 = scmp.lt.s32.totalorder %s27, 5
      %p462 = pnand %p460, %p461
      %p463 = pneg %p462
      // Predicated region
      $region9: #{tpu_custom_call.1} parent=5 // pred_check
        _
      $region10: #{tpu_custom_call.1} parent=5 // pred_check_branch
        %465 = sbr.rel (%p462) target = $region12
      $region11: #{tpu_custom_call.1} parent=5 // pred_region
        %s466 = ssub.s32 %s27, 1
        // Predicated region
        $region13: #{tpu_custom_call.1} parent=11 // pred_check
          %p467 = pneg %p88
        $region14: #{tpu_custom_call.1} parent=11 // pred_check_branch
          %469 = sbr.rel (%p467) target = $region16
        $region15: #{tpu_custom_call.1} parent=11 // pred_region
          _
        $region16: #{tpu_custom_call.1} parent=11 // pred_fallthru
          _
        // Predicated region
        $region17: #{tpu_custom_call.1} parent=11 // pred_check
          %p470 = pneg %p109
        $region18: #{tpu_custom_call.1} parent=11 // pred_check_branch
          %472 = sbr.rel (%p470) target = $region20
        $region19: #{tpu_custom_call.1} parent=11 // pred_region
          _
        $region20: #{tpu_custom_call.1} parent=11 // pred_fallthru
          _
        // Predicated region
        $region21: #{tpu_custom_call.1} parent=11 // pred_check
          %p473 = pneg %p130
        $region22: #{tpu_custom_call.1} parent=11 // pred_check_branch
          %475 = sbr.rel (%p473) target = $region24
        $region23: #{tpu_custom_call.1} parent=11 // pred_region
          _
        $region24: #{tpu_custom_call.1} parent=11 // pred_fallthru
          _
        // Predicated region
        $region25: #{tpu_custom_call.1} parent=11 // pred_check
          %p476 = pneg %p151
        $region26: #{tpu_custom_call.1} parent=11 // pred_check_branch
          %478 = sbr.rel (%p476) target = $region28
        $region27: #{tpu_custom_call.1} parent=11 // pred_region
          _
        $region28: #{tpu_custom_call.1} parent=11 // pred_fallthru
          _
        // Predicated region
        $region29: #{tpu_custom_call.1} parent=11 // pred_check
          %p479 = pneg %p172
        $region30: #{tpu_custom_call.1} parent=11 // pred_check_branch
          %481 = sbr.rel (%p479) target = $region32
        $region31: #{tpu_custom_call.1} parent=11 // pred_region
          _
        $region32: #{tpu_custom_call.1} parent=11 // pred_fallthru
          _
        // Predicated region
        $region33: #{tpu_custom_call.1} parent=11 // pred_check
          %p482 = pneg %p193
        $region34: #{tpu_custom_call.1} parent=11 // pred_check_branch
          %484 = sbr.rel (%p482) target = $region36
        $region35: #{tpu_custom_call.1} parent=11 // pred_region
          _
        $region36: #{tpu_custom_call.1} parent=11 // pred_fallthru
          _
        // Predicated region
        $region37: #{tpu_custom_call.1} parent=11 // pred_check
          %p485 = pneg %p214
        $region38: #{tpu_custom_call.1} parent=11 // pred_check_branch
          %487 = sbr.rel (%p485) target = $region40
        $region39: #{tpu_custom_call.1} parent=11 // pred_region
          _
        $region40: #{tpu_custom_call.1} parent=11 // pred_fallthru
          _
        // Predicated region
        $region41: #{tpu_custom_call.1} parent=11 // pred_check
          %p488 = pneg %p235
        $region42: #{tpu_custom_call.1} parent=11 // pred_check_branch
          %490 = sbr.rel (%p488) target = $region44
        $region43: #{tpu_custom_call.1} parent=11 // pred_region
          _
        $region44: #{tpu_custom_call.1} parent=11 // pred_fallthru
          _
        // Predicated region
        $region45: #{tpu_custom_call.1} parent=11 // pred_check
          %p491 = pneg %p256
        $region46: #{tpu_custom_call.1} parent=11 // pred_check_branch
          %493 = sbr.rel (%p491) target = $region48
        $region47: #{tpu_custom_call.1} parent=11 // pred_region
          _
        $region48: #{tpu_custom_call.1} parent=11 // pred_fallthru
          _
        // Predicated region
        $region49: #{tpu_custom_call.1} parent=11 // pred_check
          %p494 = pneg %p277
        $region50: #{tpu_custom_call.1} parent=11 // pred_check_branch
          %496 = sbr.rel (%p494) target = $region52
        $region51: #{tpu_custom_call.1} parent=11 // pred_region
          _
        $region52: #{tpu_custom_call.1} parent=11 // pred_fallthru
          _
        // Predicated region
        $region53: #{tpu_custom_call.1} parent=11 // pred_check
          %p497 = pneg %p298
        $region54: #{tpu_custom_call.1} parent=11 // pred_check_branch
          %499 = sbr.rel (%p497) target = $region56
        $region55: #{tpu_custom_call.1} parent=11 // pred_region
          _
        $region56: #{tpu_custom_call.1} parent=11 // pred_fallthru
          _
        // Predicated region
        $region57: #{tpu_custom_call.1} parent=11 // pred_check
          %p500 = pneg %p319
        $region58: #{tpu_custom_call.1} parent=11 // pred_check_branch
          %502 = sbr.rel (%p500) target = $region60
        $region59: #{tpu_custom_call.1} parent=11 // pred_region
          _
        $region60: #{tpu_custom_call.1} parent=11 // pred_fallthru
          _
        // Predicated region
        $region61: #{tpu_custom_call.1} parent=11 // pred_check
          %p503 = pneg %p340
        $region62: #{tpu_custom_call.1} parent=11 // pred_check_branch
          %505 = sbr.rel (%p503) target = $region64
        $region63: #{tpu_custom_call.1} parent=11 // pred_region
          _
        $region64: #{tpu_custom_call.1} parent=11 // pred_fallthru
          _
        // Predicated region
        $region65: #{tpu_custom_call.1} parent=11 // pred_check
          %p506 = pneg %p361
        $region66: #{tpu_custom_call.1} parent=11 // pred_check_branch
          %508 = sbr.rel (%p506) target = $region68
        $region67: #{tpu_custom_call.1} parent=11 // pred_region
          _
        $region68: #{tpu_custom_call.1} parent=11 // pred_fallthru
          _
        // Predicated region
        $region69: #{tpu_custom_call.1} parent=11 // pred_check
          %p509 = pneg %p382
        $region70: #{tpu_custom_call.1} parent=11 // pred_check_branch
          %511 = sbr.rel (%p509) target = $region72
        $region71: #{tpu_custom_call.1} parent=11 // pred_region
          _
        $region72: #{tpu_custom_call.1} parent=11 // pred_fallthru
          _
        // Predicated region
        $region73: #{tpu_custom_call.1} parent=11 // pred_check
          %p512 = pneg %p403
        $region74: #{tpu_custom_call.1} parent=11 // pred_check_branch
          %514 = sbr.rel (%p512) target = $region76
        $region75: #{tpu_custom_call.1} parent=11 // pred_region
          _
        $region76: #{tpu_custom_call.1} parent=11 // pred_fallthru
          _
        // Predicated region
        $region77: #{tpu_custom_call.1} parent=11 // pred_check
          %p515 = pneg %p424
        $region78: #{tpu_custom_call.1} parent=11 // pred_check_branch
          %517 = sbr.rel (%p515) target = $region80
        $region79: #{tpu_custom_call.1} parent=11 // pred_region
          _
        $region80: #{tpu_custom_call.1} parent=11 // pred_fallthru
          _
      $region12: #{tpu_custom_call.1} parent=5 // pred_fallthru
        _
      %p518 = scmp.lt.s32.totalorder %s27, 4
      // Predicated region
      $region81: #{tpu_custom_call.1} parent=5 // pred_check
        %p519 = pneg %p518
      $region82: #{tpu_custom_call.1} parent=5 // pred_check_branch
        %521 = sbr.rel (%p519) target = $region84
      $region83: #{tpu_custom_call.1} parent=5 // pred_region
        // Predicated region
        $region85: #{tpu_custom_call.1} parent=83 // pred_check
          %p522 = pneg %p61
        $region86: #{tpu_custom_call.1} parent=83 // pred_check_branch
          %524 = sbr.rel (%p522) target = $region88
        $region87: #{tpu_custom_call.1} parent=83 // pred_region
          %p525 = scmp.lt.s32.totalorder %s34, 1
          %s526 = scalar_select %p525, %s34, 1
          %p527 = scmp.lt.s32.totalorder %s35, 1
          %s528 = scalar_select %p527, %s35, 1
          %s529 = smul.addr %s528, 3
          %s530 = smul.addr %s526, 6
          %s531 = sadd.s32 %s529, %s530
          %s532 = smul.addr %s531, 4
          %s533 = scalar_lea.vmem %s0, %s532
        $region88: #{tpu_custom_call.1} parent=83 // pred_fallthru
          _
      $region84: #{tpu_custom_call.1} parent=5 // pred_fallthru
        _
      %p534 = scmp.le.s32.totalorder 1, %s27
      %p535 = scmp.lt.s32.totalorder %s27, 5
      %p536 = pnand %p534, %p535
      %p537 = pneg %p536
      // Predicated region
      $region89: #{tpu_custom_call.1} parent=5 // pred_check
        _
      $region90: #{tpu_custom_call.1} parent=5 // pred_check_branch
        %539 = sbr.rel (%p536) target = $region92
      $region91: #{tpu_custom_call.1} parent=5 // pred_region
        %s540 = ssub.s32 %s27, 1
        %p541 = scmp.lt.s32.totalorder %s36, 1
        %s542 = scalar_select %p541, %s36, 1
        %p543 = scmp.lt.s32.totalorder %s37, 1
        %s544 = scalar_select %p543, %s37, 1
        %s545 = smul.addr %s544, 3
        %s546 = smul.addr %s542, 6
        %s547 = sadd.s32 %s545, %s546
        %s548 = smul.addr %s547, 4
        %s549 = scalar_lea.vmem %s0, %s548
        %p550 = pneg %p67
        %p551 = pneg %p64
        %p552 = pneg %p88
        %p553 = pneg %p85
        %p554 = pneg %p109
        %p555 = pneg %p106
        %p556 = pneg %p130
        %p557 = pneg %p127
        %p558 = pneg %p151
        %p559 = pneg %p148
        %p560 = pneg %p172
        %p561 = pneg %p169
        %p562 = pneg %p193
        %p563 = pneg %p190
        %p564 = pneg %p214
        %p565 = pneg %p211
        %p566 = pneg %p235
        %p567 = pneg %p232
        %p568 = pneg %p256
        %p569 = pneg %p253
        %p570 = pneg %p277
        %p571 = pneg %p274
        %p572 = pneg %p298
        %p573 = pneg %p295
        %p574 = pneg %p319
        %p575 = pneg %p316
        %p576 = pneg %p340
        %p577 = pneg %p337
        %p578 = pneg %p361
        %p579 = pneg %p358
        %p580 = pneg %p382
        %p581 = pneg %p379
        %p582 = pneg %p403
        %p583 = pneg %p400
        %p584 = pneg %p424
        %p585 = pneg %p421
        %p586 = pneg %p452
        %p587 = pneg %p449
        %s588 = sand.u32 %s439, 1
        %s589 = scalar_lea.sflag [#allocation4], %s588
        %s590 = sand.u32 %s439, 1
        %s591 = smul.addr %s590, 8
        %s592 = scalar_lea.vmem [#allocation3], %s591
        %p593 = scmp.lt.s32.totalorder %s36, 1
        %s594 = scalar_select %p593, %s36, 1
        %p595 = scmp.lt.s32.totalorder %s37, 1
        %s596 = scalar_select %p595, %s37, 1
        %s597 = smul.addr %s596, 3
        %s598 = smul.addr %s594, 6
        %s599 = sadd.s32 %s597, %s598
        %s600 = smul.addr %s599, 4
        %s601 = scalar_lea.vmem %s0, %s600
        %v603 = vld [vmem:[%s601] sm:$0xf]
        %v604 = vld [vmem:[%s601 + $0x4] sm:$0xf]
        %v605 = vld [vmem:[%s601 + $0x8] sm:$0xf]
        %v606 = vunpack.c.l.bf16 %v603
        %v607 = vunpack.c.l.bf16 %v604
        %v608 = vunpack.c.l.bf16 %v605
        %v609 = vld [vmem:[%s1] sm:$0x1]
        %v610 = vld [vmem:[%s2] sm:$0x1]
        %vm611 = vcmask 261120
        %v612 = vsel %vm611, %v606, 0.0
        %613 = vadd.xlane.f32.xlu0 %v612
        %v614 = vpop.xlane.xlu0 %613
        %v615 = vsel %vm611, %v607, 0.0
        %616 = vadd.xlane.f32.xlu0 %v615
        %v617 = vpop.xlane.xlu0 %616
        %v618 = vsel %vm611, %v608, 0.0
        %619 = vadd.xlane.f32.xlu0 %v618
        %v620 = vpop.xlane.xlu0 %619
        %v621 = vrcp.pop 32.0
        %v622 = vmul.f32 32.0, %v621
        %v623 = vsub.f32 1.0, %v622
        %v624 = vmul.f32 %v621, %v623
        %v625 = vadd.f32 %v621, %v624
        %vm626 = vweird.f32 %v621
        %v627 = vsel %vm626, %v621, %v625
        %v628 = vmul.f32 %v614, %v627
        %v629 = vmul.f32 %v617, %v627
        %v630 = vmul.f32 %v620, %v627
        %v631 = vsub.f32 %v606, %v628
        %v632 = vsub.f32 %v607, %v629
        %v633 = vsub.f32 %v608, %v630
        %v634 = vmul.f32 %v631, %v631
        %v635 = vmul.f32 %v632, %v632
        %v636 = vmul.f32 %v633, %v633
        %v637 = vsel %vm611, %v634, 0.0
        %638 = vadd.xlane.f32.xlu0 %v637
        %v639 = vpop.xlane.xlu0 %638
        %v640 = vsel %vm611, %v635, 0.0
        %641 = vadd.xlane.f32.xlu0 %v640
        %v642 = vpop.xlane.xlu0 %641
        %v643 = vsel %vm611, %v636, 0.0
        %644 = vadd.xlane.f32.xlu0 %v643
        %v645 = vpop.xlane.xlu0 %644
        %v646 = vmul.f32 %v639, %v627
        %v647 = vmul.f32 %v642, %v627
        %v648 = vmul.f32 %v645, %v627
        %v649 = vadd.f32 %v646, 1e-05
        %v650 = vadd.f32 %v647, 1e-05
        %v651 = vadd.f32 %v648, 1e-05
        %v652 = vrsqrt.pop %v649
        %v653 = vmul.f32 %v652, %v649
        %v654 = vmul.f32 %v653, %v652
        %v655 = vmul.f32 0.5, %v654
        %v656 = vsub.f32 1.5, %v655
        %v657 = vmul.f32 %v652, %v656
        %vm658 = vweird.f32 %v649
        %vm659 = vweird.f32 %v652
        %vm660 = vmor %vm658, %vm659
        %v661 = vsel %vm660, %v652, %v657
        %v662 = vrsqrt.pop %v650
        %v663 = vmul.f32 %v662, %v650
        %v664 = vmul.f32 %v663, %v662
        %v665 = vmul.f32 0.5, %v664
        %v666 = vsub.f32 1.5, %v665
        %v667 = vmul.f32 %v662, %v666
        %vm668 = vweird.f32 %v650
        %vm669 = vweird.f32 %v662
        %vm670 = vmor %vm668, %vm669
        %v671 = vsel %vm670, %v662, %v667
        %v672 = vrsqrt.pop %v651
        %v673 = vmul.f32 %v672, %v651
        %v674 = vmul.f32 %v673, %v672
        %v675 = vmul.f32 0.5, %v674
        %v676 = vsub.f32 1.5, %v675
        %v677 = vmul.f32 %v672, %v676
        %vm678 = vweird.f32 %v651
        %vm679 = vweird.f32 %v672
        %vm680 = vmor %vm678, %vm679
        %v681 = vsel %vm680, %v672, %v677
        %v682 = vmul.f32 %v631, %v661
        %v683 = vmul.f32 %v632, %v671
        %v684 = vmul.f32 %v633, %v681
        %v686 = vperm.slane %v609, 0
        %v688 = vmul.f32 %v682, %v686
        %v689 = vmul.f32 %v683, %v686
        %v690 = vmul.f32 %v684, %v686
        %v692 = vperm.slane %v610, 0
        %v694 = vadd.f32 %v688, %v692
        %v695 = vadd.f32 %v689, %v692
        %v696 = vadd.f32 %v690, %v692
        %v697 = vpack.c.bf16 %v695, %v694
        %v698 = vpack.c.bf16 %v696, %v696
        %v699 = vld [vmem:[%s3] sm:$0xf]
        %v700 = vld [vmem:[%s3 + $0x4] sm:$0xf]
        %v701 = vld [vmem:[%s3 + $0x8] sm:$0xf]
        %v702 = vld [vmem:[%s3 + $0xc] sm:$0xf]
        %v703 = vld [vmem:[%s4] sm:$0x1]
        %v705 = vperm.slane %v703, 0
        %v711 = vunpack.c.l.b16 %v699
        %v712 = vunpack.c.l.b16 %v700
        %v713 = vunpack.c.l.b16 %v701
        %v714 = vunpack.c.l.b16 %v702
        %v715 = vpack.c.b16 %v712, %v711
        %v716 = vpack.c.b16 %v714, %v713
        %v720 = vsel %vm611, %v697, 0
        %v723 = vsel %vm611, %v698, 0
        %725 = vmatpush.bf16.msra.mxu0 0
        %726 = vmatpush.bf16.msra.mxu0 0
        %727 = vmatpush.bf16.msra.mxu0 0
        %728 = vmatpush.bf16.msra.mxu0 0
        %729 = vmatpush.bf16.msra.mxu0 0
        %730 = vmatpush.bf16.msra.mxu0 0
        %731 = vmatpush.bf16.msra.mxu0 %v716
        %732 = vmatpush.bf16.msra.mxu0 %v715
        %733 = vmatmul.bf16.gmra.mxu0 %v720
        %v734 = vpop.f32.mrf.mxu0
        %v735 = vadd.f32 %v705, %v734
        %v736 = vpop.f32.mrf.mxu0
        %v737 = vadd.f32 %v705, %v736
        %738 = vmatmul.bf16.gmra.mxu0 %v723
        %v739 = vpop.f32.mrf.mxu0
        %v740 = vadd.f32 %v705, %v739
        %v741 = vpop.f32.mrf.mxu0
        %742 = vdwg.mxu0
        %v743 = vxor.u32 %v735, 2147483648
        %v744 = vxor.u32 %v737, 2147483648
        %v745 = vxor.u32 %v740, 2147483648
        %v746 = vmul.f32 %v743, 1.442695
        %v747 = vpow.pop %v746
        %v748 = vmul.f32 %v744, 1.442695
        %v749 = vpow.pop %v748
        %v750 = vmul.f32 %v745, 1.442695
        %v751 = vpow.pop %v750
        %v752 = vadd.f32 %v747, 1.0
        %v753 = vadd.f32 %v749, 1.0
        %v754 = vadd.f32 %v751, 1.0
        %v755 = vrcp.pop %v752
        %v756 = vmul.f32 %v752, %v755
        %v757 = vsub.f32 1.0, %v756
        %v758 = vmul.f32 %v755, %v757
        %v759 = vadd.f32 %v755, %v758
        %vm760 = vweird.f32 %v752
        %vm761 = vweird.f32 %v755
        %vm762 = vmor %vm760, %vm761
        %v763 = vsel %vm762, %v755, %v759
        %v764 = vand.u32 2147483647, %v752
        %vm765 = vcmp.eq.f32.partialorder %v764, 8.507059e+37
        %v766 = vand.u32 %v752, 2147483648
        %v767 = vor.u32 1.1754944e-38, %v766
        %v768 = vsel %vm765, %v767, %v763
        %v769 = vmul.f32 1.0, %v768
        %v770 = vrcp.pop %v753
        %v771 = vmul.f32 %v753, %v770
        %v772 = vsub.f32 1.0, %v771
        %v773 = vmul.f32 %v770, %v772
        %v774 = vadd.f32 %v770, %v773
        %vm775 = vweird.f32 %v753
        %vm776 = vweird.f32 %v770
        %vm777 = vmor %vm775, %vm776
        %v778 = vsel %vm777, %v770, %v774
        %v779 = vand.u32 2147483647, %v753
        %vm780 = vcmp.eq.f32.partialorder %v779, 8.507059e+37
        %v781 = vand.u32 %v753, 2147483648
        %v782 = vor.u32 1.1754944e-38, %v781
        %v783 = vsel %vm780, %v782, %v778
        %v784 = vmul.f32 1.0, %v783
        %v785 = vrcp.pop %v754
        %v786 = vmul.f32 %v754, %v785
        %v787 = vsub.f32 1.0, %v786
        %v788 = vmul.f32 %v785, %v787
        %v789 = vadd.f32 %v785, %v788
        %vm790 = vweird.f32 %v754
        %vm791 = vweird.f32 %v785
        %vm792 = vmor %vm790, %vm791
        %v793 = vsel %vm792, %v785, %v789
        %v794 = vand.u32 2147483647, %v754
        %vm795 = vcmp.eq.f32.partialorder %v794, 8.507059e+37
        %v796 = vand.u32 %v754, 2147483648
        %v797 = vor.u32 1.1754944e-38, %v796
        %v798 = vsel %vm795, %v797, %v793
        %v799 = vmul.f32 1.0, %v798
        %v800 = vmul.f32 %v735, %v769
        %v801 = vmul.f32 %v737, %v784
        %v802 = vmul.f32 %v740, %v799
        %806 = vrot.lane.b32.xlu0 %v800, 96
        %v807 = vpop.permute.xlu0 %806
        %808 = vrot.lane.b32.xlu0 %v801, 96
        %v809 = vpop.permute.xlu0 %808
        %810 = vrot.lane.b32.xlu0 %v802, 96
        %v811 = vpop.permute.xlu0 %810
        %v815 = vmul.f32 %v735, %v807
        %v816 = vmul.f32 %v737, %v809
        %v817 = vmul.f32 %v740, %v811
        %s818 = smul.u32 %s37, 8
        %s819 = ssub.s32 %s818, 8
        %v820 = vlaneseq
        %v821 = vshrl.u32 %v820, 7
        %v822 = vadd.s32 %v821, 8
        %v823 = vadd.s32 %v821, 16
        %v824 = vstv %s819
        %v825 = vadd.s32 %v824, %v821
        %v826 = vadd.s32 %v824, %v822
        %v827 = vadd.s32 %v824, %v823
        %vm828 = vcmp.ge.s32.totalorder %v825, 0
        %vm829 = vcmp.ge.s32.totalorder %v826, 0
        %vm830 = vcmp.ge.s32.totalorder %v827, 0
        %vm831 = vcmp.lt.s32.totalorder %v825, 16
        %vm832 = vcmp.lt.s32.totalorder %v826, 16
        %vm833 = vcmp.lt.s32.totalorder %v827, 16
        %vm834 = vmand %vm828, %vm831
        %vm835 = vmand %vm829, %vm832
        %vm836 = vmand %vm830, %vm833
        %v837 = vsel %vm834, 1, 0
        %v838 = vsel %vm835, 1, 0
        %v839 = vsel %vm836, 1, 0
        %vm840 = vcmp.eq.s32.totalorder %v837, 1
        %vm841 = vcmp.eq.s32.totalorder %v838, 1
        %vm842 = vcmp.eq.s32.totalorder %v839, 1
        %v843 = vsel %vm840, %v815, 0.0
        %v844 = vsel %vm841, %v816, 0.0
        %v845 = vsel %vm842, %v817, 0.0
        %v846 = vpack.c.bf16 %v843, %v843
        %v847 = vpack.c.bf16 %v844, %v844
        %v848 = vpack.c.bf16 %v845, %v845
        %vm849 = vcmask 257024
        %850 = vst.msk [vmem:[#allocation2] sm:$0xf] %vm849, %v846
        %851 = vst.msk [vmem:[#allocation2 + $0x4] sm:$0xf] %vm849, %v847
        %852 = vst.msk [vmem:[#allocation2 + $0x8] sm:$0xf] %vm849, %v848
        %v853 = vld [vmem:[#allocation2] sm:$0xf]
        %v854 = vld [vmem:[#allocation2 + $0x4] sm:$0x1]
        %v855 = vld [vmem:[#allocation2] sm:$0xe]
        %v856 = vld [vmem:[#allocation2 + $0x4] sm:$0x3]
        %v857 = vld [vmem:[#allocation2] sm:$0xc]
        %v858 = vld [vmem:[#allocation2 + $0x4] sm:$0x7]
        %v859 = vld [vmem:[#allocation2] sm:$0x8]
        %v860 = vld [vmem:[#allocation2 + $0x4] sm:$0xf]
        %v861 = vld [vmem:[#allocation2 + $0x8] sm:$0x1]
        %v862 = vld [vmem:[#allocation2 + $0x4] sm:$0xe]
        %v863 = vld [vmem:[#allocation2 + $0x8] sm:$0x3]
        %v864 = vld [vmem:[#allocation2 + $0x4] sm:$0xc]
        %v865 = vld [vmem:[#allocation2 + $0x8] sm:$0x7]
        %v866 = vld [vmem:[#allocation2 + $0x4] sm:$0x8]
        %v867 = vld [vmem:[#allocation2 + $0x8] sm:$0xf]
        %v870 = vunpack.c.l.b16 %v853
        %v871 = vunpack.c.l.b16 %v854
        %v872 = vpack.c.b16 %v871, %v870
        %v874 = vshrl.u32 %v872, 16
        %v876 = vshll.u32 %v872, 16
        %v878 = vrot.slane %v876, 1
        %v879 = vor.u32 %v874, %v878
        %880 = vrot.lane.b32.xlu0 %v879, 32
        %v881 = vpop.permute.xlu0 %880
        %v883 = vunpack.c.l.b16 %v855
        %v884 = vpack.c.b16 %v871, %v883
        %v885 = vrot.slane %v884, 1
        %886 = vrot.lane.b32.xlu0 %v885, 64
        %v887 = vpop.permute.xlu0 %886
        %v889 = vunpack.c.l.b16 %v856
        %v890 = vpack.c.b16 %v889, %v883
        %v892 = vshrl.u32 %v890, 16
        %v894 = vrot.slane %v892, 1
        %v895 = vshll.u32 %v890, 16
        %v897 = vrot.slane %v895, 2
        %v898 = vor.u32 %v894, %v897
        %899 = vrot.lane.b32.xlu0 %v898, 96
        %v900 = vpop.permute.xlu0 %899
        %v902 = vunpack.c.l.b16 %v857
        %v903 = vpack.c.b16 %v889, %v902
        %v904 = vrot.slane %v903, 2
        %v906 = vunpack.c.l.b16 %v858
        %v907 = vpack.c.b16 %v906, %v902
        %v909 = vshrl.u32 %v907, 16
        %v911 = vrot.slane %v909, 2
        %v912 = vshll.u32 %v907, 16
        %v914 = vrot.slane %v912, 3
        %v915 = vor.u32 %v911, %v914
        %916 = vrot.lane.b32.xlu0 %v915, 32
        %v917 = vpop.permute.xlu0 %916
        %v919 = vunpack.c.l.b16 %v859
        %v920 = vpack.c.b16 %v906, %v919
        %v921 = vrot.slane %v920, 3
        %922 = vrot.lane.b32.xlu0 %v921, 64
        %v923 = vpop.permute.xlu0 %922
        %v925 = vunpack.c.l.b16 %v860
        %v926 = vpack.c.b16 %v925, %v919
        %v928 = vshrl.u32 %v926, 16
        %v930 = vrot.slane %v928, 3
        %v931 = vshll.u32 %v926, 16
        %v933 = vrot.slane %v931, 4
        %v934 = vor.u32 %v930, %v933
        %935 = vrot.lane.b32.xlu0 %v934, 96
        %v936 = vpop.permute.xlu0 %935
        %v938 = vunpack.c.l.b16 %v861
        %v939 = vpack.c.b16 %v938, %v925
        %v941 = vshrl.u32 %v939, 16
        %v943 = vshll.u32 %v939, 16
        %v945 = vrot.slane %v943, 1
        %v946 = vor.u32 %v941, %v945
        %947 = vrot.lane.b32.xlu0 %v946, 32
        %v948 = vpop.permute.xlu0 %947
        %v950 = vunpack.c.l.b16 %v862
        %v951 = vpack.c.b16 %v938, %v950
        %v952 = vrot.slane %v951, 1
        %953 = vrot.lane.b32.xlu0 %v952, 64
        %v954 = vpop.permute.xlu0 %953
        %v956 = vunpack.c.l.b16 %v863
        %v957 = vpack.c.b16 %v956, %v950
        %v959 = vshrl.u32 %v957, 16
        %v961 = vrot.slane %v959, 1
        %v962 = vshll.u32 %v957, 16
        %v964 = vrot.slane %v962, 2
        %v965 = vor.u32 %v961, %v964
        %966 = vrot.lane.b32.xlu0 %v965, 96
        %v967 = vpop.permute.xlu0 %966
        %v969 = vunpack.c.l.b16 %v864
        %v970 = vpack.c.b16 %v956, %v969
        %v971 = vrot.slane %v970, 2
        %v973 = vunpack.c.l.b16 %v865
        %v974 = vpack.c.b16 %v973, %v969
        %v976 = vshrl.u32 %v974, 16
        %v978 = vrot.slane %v976, 2
        %v979 = vshll.u32 %v974, 16
        %v981 = vrot.slane %v979, 3
        %v982 = vor.u32 %v978, %v981
        %983 = vrot.lane.b32.xlu0 %v982, 32
        %v984 = vpop.permute.xlu0 %983
        %v986 = vunpack.c.l.b16 %v866
        %v987 = vpack.c.b16 %v973, %v986
        %v988 = vrot.slane %v987, 3
        %989 = vrot.lane.b32.xlu0 %v988, 64
        %v990 = vpop.permute.xlu0 %989
        %v992 = vunpack.c.l.b16 %v867
        %v993 = vpack.c.b16 %v992, %v986
        %v995 = vshrl.u32 %v993, 16
        %v997 = vrot.slane %v995, 3
        %v998 = vshll.u32 %v993, 16
        %v1000 = vrot.slane %v998, 4
        %v1001 = vor.u32 %v997, %v1000
        %1002 = vrot.lane.b32.xlu0 %v1001, 96
        %v1003 = vpop.permute.xlu0 %1002
        %v1006 = vsel %vm611, %v853, %v881
        %vm1007 = vcmask 523264
        %v1009 = vsel %vm1007, %v1006, %v887
        %vm1010 = vcmask 785408
        %v1012 = vsel %vm1010, %v1009, %v900
        %v1016 = vsel %vm611, %v904, %v917
        %v1018 = vsel %vm1007, %v1016, %v923
        %v1020 = vsel %vm1010, %v1018, %v936
        %v1024 = vsel %vm611, %v860, %v948
        %v1026 = vsel %vm1007, %v1024, %v954
        %v1028 = vsel %vm1010, %v1026, %v967
        %v1032 = vsel %vm611, %v971, %v984
        %v1034 = vsel %vm1007, %v1032, %v990
        %v1036 = vsel %vm1010, %v1034, %v1003
        %v1038 = vld [vmem:[%s5] sm:$0xf]
        %v1039 = vld [vmem:[%s5 + $0x4] sm:$0xf]
        %v1040 = vld [vmem:[%s5 + $0x8] sm:$0xf]
        %v1041 = vld [vmem:[%s5 + $0xc] sm:$0xf]
        %v1042 = vld [vmem:[%s5 + $0x10] sm:$0xf]
        %v1043 = vld [vmem:[%s5 + $0x14] sm:$0xf]
        %v1044 = vld [vmem:[%s5 + $0x18] sm:$0xf]
        %v1045 = vld [vmem:[%s5 + $0x1c] sm:$0xf]
        %v1046 = vld [vmem:[%s5 + $0x20] sm:$0xf]
        %v1047 = vld [vmem:[%s5 + $0x24] sm:$0xf]
        %v1048 = vld [vmem:[%s5 + $0x28] sm:$0xf]
        %v1049 = vld [vmem:[%s5 + $0x2c] sm:$0xf]
        %v1050 = vld [vmem:[%s5 + $0x30] sm:$0xf]
        %v1051 = vld [vmem:[%s5 + $0x34] sm:$0xf]
        %v1052 = vld [vmem:[%s5 + $0x38] sm:$0xf]
        %v1053 = vld [vmem:[%s5 + $0x3c] sm:$0xf]
        %v1054 = vld [vmem:[%s5 + $0x40] sm:$0xf]
        %v1055 = vld [vmem:[%s5 + $0x44] sm:$0xf]
        %v1056 = vld [vmem:[%s5 + $0x48] sm:$0xf]
        %v1057 = vld [vmem:[%s5 + $0x4c] sm:$0xf]
        %v1058 = vld [vmem:[%s5 + $0x50] sm:$0xf]
        %v1059 = vld [vmem:[%s5 + $0x54] sm:$0xf]
        %v1060 = vld [vmem:[%s5 + $0x58] sm:$0xf]
        %v1061 = vld [vmem:[%s5 + $0x5c] sm:$0xf]
        %v1062 = vld [vmem:[%s5 + $0x60] sm:$0xf]
        %v1063 = vld [vmem:[%s5 + $0x64] sm:$0xf]
        %v1064 = vld [vmem:[%s5 + $0x68] sm:$0xf]
        %v1065 = vld [vmem:[%s5 + $0x6c] sm:$0xf]
        %v1066 = vld [vmem:[%s5 + $0x70] sm:$0xf]
        %v1067 = vld [vmem:[%s5 + $0x74] sm:$0xf]
        %v1068 = vld [vmem:[%s5 + $0x78] sm:$0xf]
        %v1069 = vld [vmem:[%s5 + $0x7c] sm:$0xf]
        %v1070 = vld [vmem:[%s5 + $0x80] sm:$0xf]
        %v1071 = vld [vmem:[%s5 + $0x84] sm:$0xf]
        %v1072 = vld [vmem:[%s5 + $0x88] sm:$0xf]
        %v1073 = vld [vmem:[%s5 + $0x8c] sm:$0xf]
        %v1074 = vld [vmem:[%s5 + $0x90] sm:$0xf]
        %v1075 = vld [vmem:[%s5 + $0x94] sm:$0xf]
        %v1076 = vld [vmem:[%s5 + $0x98] sm:$0xf]
        %v1077 = vld [vmem:[%s5 + $0x9c] sm:$0xf]
        %v1078 = vld [vmem:[%s5 + $0xa0] sm:$0xf]
        %v1079 = vld [vmem:[%s5 + $0xa4] sm:$0xf]
        %v1080 = vld [vmem:[%s5 + $0xa8] sm:$0xf]
        %v1081 = vld [vmem:[%s5 + $0xac] sm:$0xf]
        %v1082 = vld [vmem:[%s5 + $0xb0] sm:$0xf]
        %v1083 = vld [vmem:[%s5 + $0xb4] sm:$0xf]
        %v1084 = vld [vmem:[%s5 + $0xb8] sm:$0xf]
        %v1085 = vld [vmem:[%s5 + $0xbc] sm:$0xf]
        %v1086 = vld [vmem:[%s5 + $0xc0] sm:$0xf]
        %v1087 = vld [vmem:[%s5 + $0xc4] sm:$0xf]
        %v1088 = vld [vmem:[%s5 + $0xc8] sm:$0xf]
        %v1089 = vld [vmem:[%s5 + $0xcc] sm:$0xf]
        %v1090 = vld [vmem:[%s5 + $0xd0] sm:$0xf]
        %v1091 = vld [vmem:[%s5 + $0xd4] sm:$0xf]
        %v1092 = vld [vmem:[%s5 + $0xd8] sm:$0xf]
        %v1093 = vld [vmem:[%s5 + $0xdc] sm:$0xf]
        %v1094 = vld [vmem:[%s5 + $0xe0] sm:$0xf]
        %v1095 = vld [vmem:[%s5 + $0xe4] sm:$0xf]
        %v1096 = vld [vmem:[%s5 + $0xe8] sm:$0xf]
        %v1097 = vld [vmem:[%s5 + $0xec] sm:$0xf]
        %v1098 = vld [vmem:[%s5 + $0xf0] sm:$0xf]
        %v1099 = vld [vmem:[%s5 + $0xf4] sm:$0xf]
        %v1100 = vld [vmem:[%s5 + $0xf8] sm:$0xf]
        %v1101 = vld [vmem:[%s5 + $0xfc] sm:$0xf]
        %v1102 = vld [vmem:[%s5 + $0x100] sm:$0xf]
        %v1103 = vld [vmem:[%s5 + $0x104] sm:$0xf]
        %v1104 = vld [vmem:[%s5 + $0x108] sm:$0xf]
        %v1105 = vld [vmem:[%s5 + $0x10c] sm:$0xf]
        %v1174 = vunpack.c.l.b16 %v1038
        %v1175 = vunpack.c.l.b16 %v1039
        %v1176 = vunpack.c.l.b16 %v1040
        %v1177 = vunpack.c.l.b16 %v1041
        %v1178 = vunpack.c.l.b16 %v1042
        %v1179 = vunpack.c.l.b16 %v1043
        %v1180 = vunpack.c.l.b16 %v1044
        %v1181 = vunpack.c.l.b16 %v1045
        %v1182 = vunpack.c.l.b16 %v1046
        %v1183 = vunpack.c.l.b16 %v1047
        %v1184 = vunpack.c.l.b16 %v1048
        %v1185 = vunpack.c.l.b16 %v1049
        %v1186 = vunpack.c.l.b16 %v1050
        %v1187 = vunpack.c.l.b16 %v1051
        %v1188 = vunpack.c.l.b16 %v1052
        %v1189 = vunpack.c.l.b16 %v1053
        %v1190 = vunpack.c.l.b16 %v1054
        %v1191 = vunpack.c.l.b16 %v1055
        %v1192 = vunpack.c.l.b16 %v1056
        %v1193 = vunpack.c.l.b16 %v1057
        %v1194 = vunpack.c.l.b16 %v1058
        %v1195 = vunpack.c.l.b16 %v1059
        %v1196 = vunpack.c.l.b16 %v1060
        %v1197 = vunpack.c.l.b16 %v1061
        %v1198 = vunpack.c.l.b16 %v1062
        %v1199 = vunpack.c.l.b16 %v1063
        %v1200 = vunpack.c.l.b16 %v1064
        %v1201 = vunpack.c.l.b16 %v1065
        %v1202 = vunpack.c.l.b16 %v1066
        %v1203 = vunpack.c.l.b16 %v1067
        %v1204 = vunpack.c.l.b16 %v1068
        %v1205 = vunpack.c.l.b16 %v1069
        %v1206 = vunpack.c.l.b16 %v1070
        %v1207 = vunpack.c.l.b16 %v1071
        %v1208 = vunpack.c.l.b16 %v1072
        %v1209 = vunpack.c.l.b16 %v1073
        %v1210 = vunpack.c.l.b16 %v1074
        %v1211 = vunpack.c.l.b16 %v1075
        %v1212 = vunpack.c.l.b16 %v1076
        %v1213 = vunpack.c.l.b16 %v1077
        %v1214 = vunpack.c.l.b16 %v1078
        %v1215 = vunpack.c.l.b16 %v1079
        %v1216 = vunpack.c.l.b16 %v1080
        %v1217 = vunpack.c.l.b16 %v1081
        %v1218 = vunpack.c.l.b16 %v1082
        %v1219 = vunpack.c.l.b16 %v1083
        %v1220 = vunpack.c.l.b16 %v1084
        %v1221 = vunpack.c.l.b16 %v1085
        %v1222 = vunpack.c.l.b16 %v1086
        %v1223 = vunpack.c.l.b16 %v1087
        %v1224 = vunpack.c.l.b16 %v1088
        %v1225 = vunpack.c.l.b16 %v1089
        %v1226 = vunpack.c.l.b16 %v1090
        %v1227 = vunpack.c.l.b16 %v1091
        %v1228 = vunpack.c.l.b16 %v1092
        %v1229 = vunpack.c.l.b16 %v1093
        %v1230 = vunpack.c.l.b16 %v1094
        %v1231 = vunpack.c.l.b16 %v1095
        %v1232 = vunpack.c.l.b16 %v1096
        %v1233 = vunpack.c.l.b16 %v1097
        %v1234 = vunpack.c.l.b16 %v1098
        %v1235 = vunpack.c.l.b16 %v1099
        %v1236 = vunpack.c.l.b16 %v1100
        %v1237 = vunpack.c.l.b16 %v1101
        %v1238 = vunpack.c.l.b16 %v1102
        %v1239 = vunpack.c.l.b16 %v1103
        %v1240 = vunpack.c.l.b16 %v1104
        %v1241 = vunpack.c.l.b16 %v1105
        %v1242 = vpack.c.b16 %v1175, %v1174
        %v1243 = vpack.c.b16 %v1177, %v1176
        %v1244 = vpack.c.b16 %v1179, %v1178
        %v1245 = vpack.c.b16 %v1181, %v1180
        %v1246 = vpack.c.b16 %v1183, %v1182
        %v1247 = vpack.c.b16 %v1185, %v1184
        %v1248 = vpack.c.b16 %v1187, %v1186
        %v1249 = vpack.c.b16 %v1189, %v1188
        %v1250 = vpack.c.b16 %v1191, %v1190
        %v1251 = vpack.c.b16 %v1193, %v1192
        %v1252 = vpack.c.b16 %v1195, %v1194
        %v1253 = vpack.c.b16 %v1197, %v1196
        %v1254 = vpack.c.b16 %v1199, %v1198
        %v1255 = vpack.c.b16 %v1201, %v1200
        %v1256 = vpack.c.b16 %v1203, %v1202
        %v1257 = vpack.c.b16 %v1205, %v1204
        %v1258 = vpack.c.b16 %v1207, %v1206
        %v1259 = vpack.c.b16 %v1209, %v1208
        %v1260 = vpack.c.b16 %v1211, %v1210
        %v1261 = vpack.c.b16 %v1213, %v1212
        %v1262 = vpack.c.b16 %v1215, %v1214
        %v1263 = vpack.c.b16 %v1217, %v1216
        %v1264 = vpack.c.b16 %v1219, %v1218
        %v1265 = vpack.c.b16 %v1221, %v1220
        %v1266 = vpack.c.b16 %v1223, %v1222
        %v1267 = vpack.c.b16 %v1225, %v1224
        %v1268 = vpack.c.b16 %v1227, %v1226
        %v1269 = vpack.c.b16 %v1229, %v1228
        %v1270 = vpack.c.b16 %v1231, %v1230
        %v1271 = vpack.c.b16 %v1233, %v1232
        %v1272 = vpack.c.b16 %v1235, %v1234
        %v1273 = vpack.c.b16 %v1237, %v1236
        %v1274 = vpack.c.b16 %v1239, %v1238
        %v1275 = vpack.c.b16 %v1241, %v1240
        %v1311 = vsel %vm611, %v867, 0
        %1313 = vmatpush.bf16.msra.mxu0 %v1249
        %1314 = vmatpush.bf16.msra.mxu0 %v1248
        %1315 = vmatpush.bf16.msra.mxu0 %v1247
        %1316 = vmatpush.bf16.msra.mxu0 %v1246
        %1317 = vmatpush.bf16.msra.mxu0 %v1245
        %1318 = vmatpush.bf16.msra.mxu0 %v1244
        %1319 = vmatpush.bf16.msra.mxu0 %v1243
        %1320 = vmatpush.bf16.msra.mxu0 %v1242
        %1321 = vmatmul.bf16.gmra.mxu0 %v1012
        %v1322 = vpop.f32.mrf.mxu0
        %v1323 = vadd.f32 0.0, %v1322
        %v1324 = vpop.f32.mrf.mxu0
        %1325 = vdwg.mxu0
        %1326 = vmatpush.bf16.msra.mxu0 %v1257
        %1327 = vmatpush.bf16.msra.mxu0 %v1256
        %1328 = vmatpush.bf16.msra.mxu0 %v1255
        %1329 = vmatpush.bf16.msra.mxu0 %v1254
        %1330 = vmatpush.bf16.msra.mxu0 %v1253
        %1331 = vmatpush.bf16.msra.mxu0 %v1252
        %1332 = vmatpush.bf16.msra.mxu0 %v1251
        %1333 = vmatpush.bf16.msra.mxu0 %v1250
        %1334 = vmatmul.bf16.gmra.mxu0 %v1020
        %v1335 = vpop.f32.mrf.mxu0
        %v1336 = vadd.f32 %v1323, %v1335
        %v1337 = vpop.f32.mrf.mxu0
        %1338 = vdwg.mxu0
        %1339 = vmatpush.bf16.msra.mxu0 %v1265
        %1340 = vmatpush.bf16.msra.mxu0 %v1264
        %1341 = vmatpush.bf16.msra.mxu0 %v1263
        %1342 = vmatpush.bf16.msra.mxu0 %v1262
        %1343 = vmatpush.bf16.msra.mxu0 %v1261
        %1344 = vmatpush.bf16.msra.mxu0 %v1260
        %1345 = vmatpush.bf16.msra.mxu0 %v1259
        %1346 = vmatpush.bf16.msra.mxu0 %v1258
        %1347 = vmatmul.bf16.gmra.mxu0 %v1028
        %v1348 = vpop.f32.mrf.mxu0
        %v1349 = vadd.f32 %v1336, %v1348
        %v1350 = vpop.f32.mrf.mxu0
        %1351 = vdwg.mxu0
        %1352 = vmatpush.bf16.msra.mxu0 %v1273
        %1353 = vmatpush.bf16.msra.mxu0 %v1272
        %1354 = vmatpush.bf16.msra.mxu0 %v1271
        %1355 = vmatpush.bf16.msra.mxu0 %v1270
        %1356 = vmatpush.bf16.msra.mxu0 %v1269
        %1357 = vmatpush.bf16.msra.mxu0 %v1268
        %1358 = vmatpush.bf16.msra.mxu0 %v1267
        %1359 = vmatpush.bf16.msra.mxu0 %v1266
        %1360 = vmatmul.bf16.gmra.mxu0 %v1036
        %v1361 = vpop.f32.mrf.mxu0
        %v1362 = vadd.f32 %v1349, %v1361
        %v1363 = vpop.f32.mrf.mxu0
        %1364 = vdwg.mxu0
        %1365 = vmatpush.bf16.msra.mxu0 0
        %1366 = vmatpush.bf16.msra.mxu0 0
        %1367 = vmatpush.bf16.msra.mxu0 0
        %1368 = vmatpush.bf16.msra.mxu0 0
        %1369 = vmatpush.bf16.msra.mxu0 0
        %1370 = vmatpush.bf16.msra.mxu0 0
        %1371 = vmatpush.bf16.msra.mxu0 %v1275
        %1372 = vmatpush.bf16.msra.mxu0 %v1274
        %1373 = vmatmul.bf16.gmra.mxu0 %v1311
        %v1374 = vpop.f32.mrf.mxu0
        %v1375 = vadd.f32 %v1362, %v1374
        %v1376 = vpop.f32.mrf.mxu0
        %1377 = vdwg.mxu0
        %v1378 = vld [vmem:[%s6] sm:$0x1]
        %v1380 = vperm.slane %v1378, 0
        %v1382 = vmul.f32 %v1375, %v1380
        %v1383 = vld [vmem:[%s7] sm:$0x1]
        %v1385 = vperm.slane %v1383, 0
        %v1387 = vadd.f32 %v1382, %v1385
        %v1388 = vxor.u32 %v1387, 2147483648
        %v1389 = vmul.f32 %v1388, 1.442695
        %v1390 = vpow.pop %v1389
        %v1391 = vadd.f32 %v1390, 1.0
        %v1392 = vrcp.pop %v1391
        %v1393 = vmul.f32 %v1391, %v1392
        %v1394 = vsub.f32 1.0, %v1393
        %v1395 = vmul.f32 %v1392, %v1394
        %v1396 = vadd.f32 %v1392, %v1395
        %vm1397 = vweird.f32 %v1391
        %vm1398 = vweird.f32 %v1392
        %vm1399 = vmor %vm1397, %vm1398
        %v1400 = vsel %vm1399, %v1392, %v1396
        %v1401 = vand.u32 2147483647, %v1391
        %vm1402 = vcmp.eq.f32.partialorder %v1401, 8.507059e+37
        %v1403 = vand.u32 %v1391, 2147483648
        %v1404 = vor.u32 1.1754944e-38, %v1403
        %v1405 = vsel %vm1402, %v1404, %v1400
        %v1406 = vmul.f32 1.0, %v1405
        %v1407 = vmul.f32 %v1387, %v1406
        %v1408 = vpack.c.bf16 %v1407, %v1407
        %v1409 = vld [vmem:[%s8] sm:$0xf]
        %v1410 = vld [vmem:[%s8 + $0x4] sm:$0xf]
        %v1411 = vld [vmem:[%s8 + $0x8] sm:$0xf]
        %v1412 = vld [vmem:[%s8 + $0xc] sm:$0xf]
        %v1413 = vld [vmem:[%s9] sm:$0x1]
        %v1415 = vperm.slane %v1413, 0
        %v1421 = vunpack.c.l.b16 %v1409
        %v1422 = vunpack.c.l.b16 %v1410
        %v1423 = vunpack.c.l.b16 %v1411
        %v1424 = vunpack.c.l.b16 %v1412
        %v1425 = vpack.c.b16 %v1422, %v1421
        %v1426 = vpack.c.b16 %v1424, %v1423
        %v1430 = vsel %vm611, %v1408, 0
        %1432 = vmatpush.bf16.msra.mxu0 0
        %1433 = vmatpush.bf16.msra.mxu0 0
        %1434 = vmatpush.bf16.msra.mxu0 0
        %1435 = vmatpush.bf16.msra.mxu0 0
        %1436 = vmatpush.bf16.msra.mxu0 0
        %1437 = vmatpush.bf16.msra.mxu0 0
        %1438 = vmatpush.bf16.msra.mxu0 %v1426
        %1439 = vmatpush.bf16.msra.mxu0 %v1425
        %1440 = vmatmul.bf16.gmra.mxu0 %v1430
        %v1441 = vpop.f32.mrf.mxu0
        %v1442 = vadd.f32 %v1415, %v1441
        %v1443 = vpop.f32.mrf.mxu0
        %1444 = vdwg.mxu0
        %v1445 = vld [vmem:[%s10] sm:$0x1]
        %v1447 = vperm.slane %v1445, 0
        %v1449 = vmul.f32 %v1442, %v1447
        %v1450 = vadd.f32 %v1449, %v607
        %v1451 = vld [vmem:[%s11] sm:$0x1]
        %v1452 = vld [vmem:[%s12] sm:$0x1]
        %v1453 = vsel %vm611, %v1450, 0.0
        %1454 = vadd.xlane.f32.xlu0 %v1453
        %v1455 = vpop.xlane.xlu0 %1454
        %v1456 = vmul.f32 %v1455, %v627
        %v1457 = vsub.f32 %v1450, %v1456
        %v1458 = vmul.f32 %v1457, %v1457
        %v1459 = vsel %vm611, %v1458, 0.0
        %1460 = vadd.xlane.f32.xlu0 %v1459
        %v1461 = vpop.xlane.xlu0 %1460
        %v1462 = vmul.f32 %v1461, %v627
        %v1463 = vadd.f32 %v1462, 1e-05
        %v1464 = vrsqrt.pop %v1463
        %v1465 = vmul.f32 %v1464, %v1463
        %v1466 = vmul.f32 %v1465, %v1464
        %v1467 = vmul.f32 0.5, %v1466
        %v1468 = vsub.f32 1.5, %v1467
        %v1469 = vmul.f32 %v1464, %v1468
        %vm1470 = vweird.f32 %v1463
        %vm1471 = vweird.f32 %v1464
        %vm1472 = vmor %vm1470, %vm1471
        %v1473 = vsel %vm1472, %v1464, %v1469
        %v1474 = vmul.f32 %v1457, %v1473
        %v1476 = vperm.slane %v1451, 0
        %v1478 = vmul.f32 %v1474, %v1476
        %v1480 = vperm.slane %v1452, 0
        %v1482 = vadd.f32 %v1478, %v1480
        %v1483 = vpack.c.bf16 %v1482, %v1482
        %v1484 = vld [vmem:[%s13] sm:$0xf]
        %v1485 = vld [vmem:[%s13 + $0x4] sm:$0xf]
        %v1486 = vld [vmem:[%s13 + $0x8] sm:$0xf]
        %v1487 = vld [vmem:[%s13 + $0xc] sm:$0xf]
        %v1488 = vld [vmem:[%s14] sm:$0x1]
        %v1490 = vperm.slane %v1488, 0
        %v1496 = vunpack.c.l.b16 %v1484
        %v1497 = vunpack.c.l.b16 %v1485
        %v1498 = vunpack.c.l.b16 %v1486
        %v1499 = vunpack.c.l.b16 %v1487
        %v1500 = vpack.c.b16 %v1497, %v1496
        %v1501 = vpack.c.b16 %v1499, %v1498
        %v1505 = vsel %vm611, %v1483, 0
        %1507 = vmatpush.bf16.msra.mxu0 0
        %1508 = vmatpush.bf16.msra.mxu0 0
        %1509 = vmatpush.bf16.msra.mxu0 0
        %1510 = vmatpush.bf16.msra.mxu0 0
        %1511 = vmatpush.bf16.msra.mxu0 0
        %1512 = vmatpush.bf16.msra.mxu0 0
        %1513 = vmatpush.bf16.msra.mxu0 %v1501
        %1514 = vmatpush.bf16.msra.mxu0 %v1500
        %1515 = vmatmul.bf16.gmra.mxu0 %v1505
        %v1516 = vpop.f32.mrf.mxu0
        %v1517 = vadd.f32 %v1490, %v1516
        %v1518 = vpop.f32.mrf.mxu0
        %1519 = vdwg.mxu0
        %v1520 = vxor.u32 %v1517, 2147483648
        %v1521 = vmul.f32 %v1520, 1.442695
        %v1522 = vpow.pop %v1521
        %v1523 = vadd.f32 %v1522, 1.0
        %v1524 = vrcp.pop %v1523
        %v1525 = vmul.f32 %v1523, %v1524
        %v1526 = vsub.f32 1.0, %v1525
        %v1527 = vmul.f32 %v1524, %v1526
        %v1528 = vadd.f32 %v1524, %v1527
        %vm1529 = vweird.f32 %v1523
        %vm1530 = vweird.f32 %v1524
        %vm1531 = vmor %vm1529, %vm1530
        %v1532 = vsel %vm1531, %v1524, %v1528
        %v1533 = vand.u32 2147483647, %v1523
        %vm1534 = vcmp.eq.f32.partialorder %v1533, 8.507059e+37
        %v1535 = vand.u32 %v1523, 2147483648
        %v1536 = vor.u32 1.1754944e-38, %v1535
        %v1537 = vsel %vm1534, %v1536, %v1532
        %v1538 = vmul.f32 1.0, %v1537
        %v1539 = vmul.f32 %v1517, %v1538
        %1541 = vrot.lane.b32.xlu0 %v1539, 64
        %v1542 = vpop.permute.xlu0 %1541
        %v1544 = vmul.f32 %v1517, %v1542
        %v1545 = vpack.c.bf16 %v1544, %v1544
        %v1546 = vld [vmem:[%s15] sm:$0xf]
        %v1547 = vld [vmem:[%s15 + $0x4] sm:$0xf]
        %v1548 = vld [vmem:[%s15 + $0x8] sm:$0xf]
        %v1549 = vld [vmem:[%s15 + $0xc] sm:$0xf]
        %v1550 = vld [vmem:[%s15 + $0x10] sm:$0xf]
        %v1551 = vld [vmem:[%s15 + $0x14] sm:$0xf]
        %v1552 = vld [vmem:[%s15 + $0x18] sm:$0xf]
        %v1553 = vld [vmem:[%s15 + $0x1c] sm:$0xf]
        %v1554 = vld [vmem:[%s16] sm:$0x1]
        %v1556 = vperm.slane %v1554, 0
        %v1566 = vunpack.c.l.b16 %v1546
        %v1567 = vunpack.c.l.b16 %v1547
        %v1568 = vunpack.c.l.b16 %v1548
        %v1569 = vunpack.c.l.b16 %v1549
        %v1570 = vunpack.c.l.b16 %v1550
        %v1571 = vunpack.c.l.b16 %v1551
        %v1572 = vunpack.c.l.b16 %v1552
        %v1573 = vunpack.c.l.b16 %v1553
        %v1574 = vpack.c.b16 %v1567, %v1566
        %v1575 = vpack.c.b16 %v1569, %v1568
        %v1576 = vpack.c.b16 %v1571, %v1570
        %v1577 = vpack.c.b16 %v1573, %v1572
        %v1583 = vsel %vm1007, %v1545, 0
        %1585 = vmatpush.bf16.msra.mxu0 0
        %1586 = vmatpush.bf16.msra.mxu0 0
        %1587 = vmatpush.bf16.msra.mxu0 0
        %1588 = vmatpush.bf16.msra.mxu0 0
        %1589 = vmatpush.bf16.msra.mxu0 %v1577
        %1590 = vmatpush.bf16.msra.mxu0 %v1576
        %1591 = vmatpush.bf16.msra.mxu0 %v1575
        %1592 = vmatpush.bf16.msra.mxu0 %v1574
        %1593 = vmatmul.bf16.gmra.mxu0 %v1583
        %v1594 = vpop.f32.mrf.mxu0
        %v1595 = vadd.f32 %v1556, %v1594
        %v1596 = vpop.f32.mrf.mxu0
        %1597 = vdwg.mxu0
        %v1598 = vld [vmem:[%s17] sm:$0x1]
        %v1600 = vperm.slane %v1598, 0
        %v1602 = vmul.f32 %v1595, %v1600
        %v1603 = vadd.f32 %v1450, %v1602
        %1604 = vst.msk [vmem:[%s592] sm:$0xff] %vm611, %v1603
        %s1605 = sand.u32 %s439, 1
        %s1606 = scalar_lea.sflag [#allocation4], %s1605
        %s1607 = sand.u32 %s439, 1
        %s1608 = smul.addr %s1607, 8
        %s1609 = scalar_lea.vmem [#allocation3], %s1608
        // Predicated region
        $region93: #{tpu_custom_call.1} parent=91 // pred_check
          %p1610 = pneg %p449
        $region94: #{tpu_custom_call.1} parent=91 // pred_check_branch
          %1612 = sbr.rel (%p1610) target = $region96
        $region95: #{tpu_custom_call.1} parent=91 // pred_region
          %1614 = vsyncadd %s1606, 0
          %s1615 = smul.addr %s36, 2
          %s1616 = sadd.s32 %s37, %s1615
          %s1617 = smul.addr %s1616, 8
          %s1618 = scalar_lea.hbm %s18, %s1617
          %s1620 = sshll.u32 %s1609, 4
          %s1621 = int_to_ptr.vmem [resolvable:$true] %s1620
          %s1622 = sshll.u32 %s1618, 4
          %s1623 = int_to_ptr.hbm [resolvable:$true] %s1622
          %1625 = dma.vmem_to_hbm [thread:$0]  %s1621, 128, %s1623, %s1606
        $region96: #{tpu_custom_call.1} parent=91 // pred_fallthru
          _
      $region92: #{tpu_custom_call.1} parent=5 // pred_fallthru
        _
      %p1626 = scmp.le.s32.totalorder 2, %s27
      // Predicated region
      $region97: #{tpu_custom_call.1} parent=5 // pred_check
        %p1627 = pneg %p1626
      $region98: #{tpu_custom_call.1} parent=5 // pred_check_branch
        %1629 = sbr.rel (%p1627) target = $region100
      $region99: #{tpu_custom_call.1} parent=5 // pred_region
        %s1630 = ssub.s32 %s27, 2
        // Predicated region
        $region101: #{tpu_custom_call.1} parent=99 // pred_check
          %p1631 = pneg %p455
        $region102: #{tpu_custom_call.1} parent=99 // pred_check_branch
          %1633 = sbr.rel (%p1631) target = $region104
        $region103: #{tpu_custom_call.1} parent=99 // pred_region
          %s1634 = sand.u32 %s440, 1
          %s1635 = scalar_lea.sflag [#allocation4], %s1634
          %s1636 = sand.u32 %s440, 1
          %s1637 = smul.addr %s1636, 8
          %s1638 = scalar_lea.vmem [#allocation3], %s1637
          %1640 = dma.done %s1635, 128
        $region104: #{tpu_custom_call.1} parent=99 // pred_fallthru
          _
      $region100: #{tpu_custom_call.1} parent=5 // pred_fallthru
        _
    $region6: #{tpu_custom_call.1} parent=1 // loop_footer
      %s31 = sadd.s32 1, %s27
    $region7: #{tpu_custom_call.1} parent=1 // loop_footer_branch
      %26 = sbr.rel target = $region3
    $region8: #{tpu_custom_call.1} parent=1 // loop_exit
      _
    %1641 = vsyncpa [#allocation4], 1
    %s1642 = scalar_lea.sflag [#allocation4], 1
    %1643 = vsyncpa %s1642, 1

</llo_original>
